<compile_context>
chip_gen: v7x
topology: tpu7x:2x2x1
jax: 0.10.0
libtpu: 0.0.40
codegen_flags: <defaults>
</compile_context>

<pallas_src>
import functools
import math

import jax
import jax.numpy as jnp
from jax.experimental import pallas as pl
from jax.experimental.pallas import tpu as pltpu


# ----------------------------------------------------------------------------
# Big tiled Linear (+ fused bias + activation) kernel for layer 1.
#   grid = (M_tiles, N_tiles, K_tiles); K innermost ("arbitrary") reduction.
#   acc_ref (tm, tn) f32 scratch persists across the K steps.
# ----------------------------------------------------------------------------
def _linear_act_kernel(x_ref, w_ref, b_ref, o_ref, acc_ref, *, act):
    k = pl.program_id(2)

    @pl.when(k == 0)
    def _():
        acc_ref[...] = jnp.zeros_like(acc_ref)

    acc_ref[...] += jnp.dot(x_ref[...], w_ref[...],
                            preferred_element_type=jnp.float32)

    @pl.when(k == pl.num_programs(2) - 1)
    def _():
        y = acc_ref[...] + b_ref[...]            # b is f32 (1, tn)
        if act == "relu":
            y = jnp.maximum(y, 0.0)
        elif act == "sigmoid":
            y = jax.nn.sigmoid(y)
        o_ref[...] = y.astype(o_ref.dtype)


def _pick_tile(dim, target, align=128):
    """Largest multiple of `align` that divides `dim` and is <= target, else
    the full dim (full-dim blocks are always legal; non-128-multiple dims fall
    back to a single full-extent block)."""
    if dim <= target or dim % align != 0:
        return dim
    best = align
    t = align
    while t <= target:
        if dim % t == 0:
            best = t
        t += align
    return best


def _pick_m_tile(M):
    if M <= 256 or M % 128 != 0:
        return M                      # whole-M path for small / odd batches
    return 256 if M % 256 == 0 else 128


def linear_act(x, w, b, act="none"):
    # x: (M, K) [bf16 or f32]; w: (K, N) [bf16 or f32]; b: (N,) f32
    M, K = x.shape
    K2, N = w.shape
    assert K == K2 and b.shape == (N,)

    tm = _pick_m_tile(M)
    tn = _pick_tile(N, 1024)          # lane-dense output tiles
    tk = _pick_tile(K, 3584)          # big MXU contraction per step

    b2 = b.reshape(1, N).astype(jnp.float32)

    xb, wb = x.dtype.itemsize, w.dtype.itemsize
    # Double-buffered inputs/outputs + resident f32 accumulator.
    vmem_needed = (2 * (tm * tk * xb + tk * tn * wb + tn * 4 + tm * tn * 4)
                   + tm * tn * 4)
    # Explicit limit (v5e default scoped VMEM is 16 MiB); keep below v7x's
    # 64 MiB physical VMEM.
    vmem_limit = int(min(max(vmem_needed * 3 // 2, 32 << 20), 56 << 20))

    cost = pl.CostEstimate(
        flops=2 * M * K * N,
        transcendentals=0,
        bytes_accessed=M * K * xb + K * N * wb + N * 4 + M * N * 4)

    kernel = functools.partial(_linear_act_kernel, act=act)
    return pl.pallas_call(
        kernel,
        out_shape=jax.ShapeDtypeStruct((M, N), jnp.float32),
        grid=(M // tm, N // tn, K // tk),
        in_specs=[
            pl.BlockSpec((tm, tk), lambda m, n, k: (m, k)),
            pl.BlockSpec((tk, tn), lambda m, n, k: (k, n)),
            pl.BlockSpec((1, tn), lambda m, n, k: (0, n)),
        ],
        out_specs=pl.BlockSpec((tm, tn), lambda m, n, k: (m, n)),
        scratch_shapes=[pltpu.VMEM((tm, tn), jnp.float32)],
        compiler_params=pltpu.CompilerParams(
            dimension_semantics=("parallel", "parallel", "arbitrary"),
            vmem_limit_bytes=vmem_limit),
        cost_estimate=cost,
    )(x, w, b2)


# ----------------------------------------------------------------------------
# Fused tail: ReLU(h @ W2 + b2) @ W3 + b3 -> Sigmoid / Softmax, one pallas_call.
# W2 (hidden,128) and W3 (128,C) fit entirely in VMEM, so no grid tiling.
# ----------------------------------------------------------------------------
def _mlp_tail_kernel(x_ref, w2_ref, b2_ref, w3_ref, b3_ref, o_ref,
                     *, num_classes):
    h = jnp.dot(x_ref[...].astype(w2_ref.dtype), w2_ref[...],
                preferred_element_type=jnp.float32)
    h = jnp.maximum(h + b2_ref[...], 0.0)
    # TODO(synk): Dropout(0.5) is identity at inference (eval mode); a training
    # path would mask here via pltpu.prng_seed / pltpu.prng_random_bits.
    y = jnp.dot(h, w3_ref[...].astype(jnp.float32),
                preferred_element_type=jnp.float32)
    y = y + b3_ref[...]
    if num_classes == 1:
        y = jax.nn.sigmoid(y)
    else:
        y = jax.nn.softmax(y, axis=-1)
    o_ref[...] = y.astype(o_ref.dtype)


def mlp_tail(x, w2, b2, w3, b3, num_classes):
    M, H = x.shape
    H2, D = w2.shape
    D2, C = w3.shape
    assert H == H2 and D == D2 and C == num_classes
    b2r = b2.reshape(1, D).astype(jnp.float32)
    b3r = b3.reshape(1, C).astype(jnp.float32)
    kernel = functools.partial(_mlp_tail_kernel, num_classes=num_classes)
    return pl.pallas_call(
        kernel,
        out_shape=jax.ShapeDtypeStruct((M, C), jnp.float32),
        grid=(1,),
        in_specs=[
            pl.BlockSpec((M, H), lambda i: (0, 0)),
            pl.BlockSpec((H, D), lambda i: (0, 0)),
            pl.BlockSpec((1, D), lambda i: (0, 0)),
            pl.BlockSpec((D, C), lambda i: (0, 0)),
            pl.BlockSpec((1, C), lambda i: (0, 0)),
        ],
        out_specs=pl.BlockSpec((M, C), lambda i: (0, 0)),
    )(x, w2, b2r, w3, b3r)


# ----------------------------------------------------------------------------
# VGGClassifier forward (eval mode) + parameter init (weights stored in bf16).
# ----------------------------------------------------------------------------
def init_classifier_params(key, input_features, hidden_size, num_classes,
                           weight_dtype=jnp.bfloat16):
    dims = [(input_features, hidden_size), (hidden_size, 128),
            (128, num_classes)]
    params = []
    for fan_in, fan_out in dims:
        key, kw, kb = jax.random.split(key, 3)
        bound = 1.0 / math.sqrt(fan_in)       # nn.Linear default init range
        w = jax.random.uniform(kw, (fan_in, fan_out), jnp.float32,
                               -bound, bound).astype(weight_dtype)
        bb = jax.random.uniform(kb, (fan_out,), jnp.float32, -bound, bound)
        params.append((w, bb))
    return params


def vgg_classifier_forward(x, params, *, num_classes=1):
    (w1, b1), (w2, b2), (w3, b3) = params
    y = x.reshape(x.shape[0], -1)             # nn.Flatten
    y = y.astype(w1.dtype)                    # small activation cast only
    y = linear_act(y, w1, b1, act="relu")     # Linear + ReLU (Dropout=identity)
    y = mlp_tail(y, w2, b2, w3, b3, num_classes)   # fused small layers + act
    return y


if __name__ == "__main__":
    key = jax.random.PRNGKey(0)
    kx, kp = jax.random.split(key)

    # Small VGG-feature-map-shaped input (batch=2, C=128, 7, 7) -> 6272 feats,
    # scaled-down hidden size; same structure as the default 25088 -> 4096.
    B, C, H, W = 2, 128, 7, 7
    hidden_size, num_classes = 512, 1
    x = jax.random.normal(kx, (B, C, H, W), jnp.float32)
    params = init_classifier_params(kp, C * H * W, hidden_size, num_classes)

    fwd = jax.jit(functools.partial(vgg_classifier_forward,
                                    num_classes=num_classes))
    out = jax.block_until_ready(fwd(x, params))

    # Pure-JAX reference (eval mode: dropout = identity), same bf16 weights
    # upcast to f32.
    def ref_fwd(xr, pr):
        y = xr.reshape(xr.shape[0], -1)
        (rw1, rb1), (rw2, rb2), (rw3, rb3) = pr
        y = jnp.maximum(y @ rw1.astype(jnp.float32) + rb1, 0.0)
        y = jnp.maximum(y @ rw2.astype(jnp.float32) + rb2, 0.0)
        y = y @ rw3.astype(jnp.float32) + rb3
        return jax.nn.sigmoid(y)

    ref = ref_fwd(x, params)

    assert out.shape == (B, num_classes), out.shape
    assert out.dtype == jnp.float32
    assert bool(jnp.all(jnp.isfinite(out)))
    assert bool(jnp.all((out >= 0.0) & (out <= 1.0)))   # sigmoid range
    assert bool(jnp.allclose(out, ref, rtol=2e-2, atol=2e-2))
    print("KERNEL_OK")
</pallas_src>

<mosaic_0001>
module attributes {stable_mosaic.version = 11 : i64} {
  func.func @_linear_act_kernel(%arg0: i32, %arg1: i32, %arg2: i32, %arg3: memref<2x896xbf16, #tpu.memory_space<vmem>>, %arg4: memref<896x512xbf16, #tpu.memory_space<vmem>>, %arg5: memref<1x512xf32, #tpu.memory_space<vmem>>, %arg6: memref<2x512xf32, #tpu.memory_space<vmem>>, %arg7: memref<2x512xf32, #tpu.memory_space<vmem>>) attributes {dimension_semantics = [#tpu.dimension_semantics<parallel>, #tpu.dimension_semantics<parallel>, #tpu.dimension_semantics<arbitrary>], iteration_bounds = array<i64: 1, 1, 7>, scalar_prefetch = 0 : i64, scratch_operands = 1 : i64, tpu.core_type = #tpu.core_type<tc>, window_params = [{transform_indices = @transform_0, window_bounds = array<i64: 2, 896>}, {transform_indices = @transform_1, window_bounds = array<i64: 896, 512>}, {transform_indices = @transform_2, window_bounds = array<i64: 1, 512>}, {transform_indices = @transform_3, window_bounds = array<i64: 2, 512>}]} {
    %c0_i32 = arith.constant 0 : i32
    %0 = arith.cmpi eq, %arg2, %c0_i32 : i32
    %1 = arith.extui %0 : i1 to i32
    %c0_i32_0 = arith.constant 0 : i32
    %2 = arith.cmpi ne, %1, %c0_i32_0 : i32
    scf.if %2 {
      %cst_9 = arith.constant 0.000000e+00 : f32
      %12 = vector.broadcast %cst_9 : f32 to vector<2x512xf32>
      %c0_10 = arith.constant 0 : index
      %c0_11 = arith.constant 0 : index
      %13 = vector.load %arg7[%c0_10, %c0_11] : memref<2x512xf32, #tpu.memory_space<vmem>>, vector<2x512xf32>
      tpu.vector_store %arg7[%c0_10, %c0_11], %12 {strides = array<i32>} : memref<2x512xf32, #tpu.memory_space<vmem>>, vector<2x512xf32>,
    } else {
    }
    %c0 = arith.constant 0 : index
    %c0_1 = arith.constant 0 : index
    %3 = vector.load %arg7[%c0, %c0_1] : memref<2x512xf32, #tpu.memory_space<vmem>>, vector<2x512xf32>
    %c0_2 = arith.constant 0 : index
    %c0_3 = arith.constant 0 : index
    %4 = vector.load %arg3[%c0_2, %c0_3] : memref<2x896xbf16, #tpu.memory_space<vmem>>, vector<2x896xbf16>
    %c0_4 = arith.constant 0 : index
    %c0_5 = arith.constant 0 : index
    %5 = vector.load %arg4[%c0_4, %c0_5] : memref<896x512xbf16, #tpu.memory_space<vmem>>, vector<896x512xbf16>
    %cst = arith.constant dense<0.000000e+00> : vector<2x512xf32>
    %6 = tpu.matmul %4, %5, %cst {dimension_numbers = #tpu.dot_dimension_numbers<[1], [0], [0], [1], [0, 0, 1, 1], [], []>} : vector<2x896xbf16>, vector<896x512xbf16>, vector<2x512xf32> -> vector<2x512xf32>
    %7 = arith.addf %3, %6 : vector<2x512xf32>
    %c0_6 = arith.constant 0 : index
    %c0_7 = arith.constant 0 : index
    %8 = vector.load %arg7[%c0_6, %c0_7] : memref<2x512xf32, #tpu.memory_space<vmem>>, vector<2x512xf32>
    tpu.vector_store %arg7[%c0_6, %c0_7], %7 {strides = array<i32>} : memref<2x512xf32, #tpu.memory_space<vmem>>, vector<2x512xf32>,
    %c6_i32 = arith.constant 6 : i32
    %9 = arith.cmpi eq, %arg2, %c6_i32 : i32
    %10 = arith.extui %9 : i1 to i32
    %c0_i32_8 = arith.constant 0 : i32
    %11 = arith.cmpi ne, %10, %c0_i32_8 : i32
    scf.if %11 {
      %c0_9 = arith.constant 0 : index
      %c0_10 = arith.constant 0 : index
      %12 = vector.load %arg7[%c0_9, %c0_10] : memref<2x512xf32, #tpu.memory_space<vmem>>, vector<2x512xf32>
      %c0_11 = arith.constant 0 : index
      %c0_12 = arith.constant 0 : index
      %13 = vector.load %arg5[%c0_11, %c0_12] : memref<1x512xf32, #tpu.memory_space<vmem>>, vector<1x512xf32>
      %14 = vector.broadcast %13 : vector<1x512xf32> to vector<2x512xf32>
      %15 = arith.addf %12, %14 : vector<2x512xf32>
      %cst_13 = arith.constant 0.000000e+00 : f32
      %16 = vector.broadcast %cst_13 : f32 to vector<2x512xf32>
      %17 = arith.maximumf %15, %16 : vector<2x512xf32>
      %c0_14 = arith.constant 0 : index
      %c0_15 = arith.constant 0 : index
      %18 = vector.load %arg6[%c0_14, %c0_15] : memref<2x512xf32, #tpu.memory_space<vmem>>, vector<2x512xf32>
      tpu.vector_store %arg6[%c0_14, %c0_15], %17 {strides = array<i32>} : memref<2x512xf32, #tpu.memory_space<vmem>>, vector<2x512xf32>,
    } else {
    }
    return
  }
  func.func @transform_0(%arg0: i32, %arg1: i32, %arg2: i32) -> (i32, i32) {
    %c0_i32 = arith.constant 0 : i32
    return %arg0, %arg2 : i32, i32
  }
  func.func @transform_1(%arg0: i32, %arg1: i32, %arg2: i32) -> (i32, i32) {
    %c0_i32 = arith.constant 0 : i32
    return %arg2, %arg1 : i32, i32
  }
  func.func @transform_2(%arg0: i32, %arg1: i32, %arg2: i32) -> (i32, i32) {
    %c0_i32 = arith.constant 0 : i32
    %c0_i32_0 = arith.constant 0 : i32
    return %c0_i32, %arg1 : i32, i32
  }
  func.func @transform_3(%arg0: i32, %arg1: i32, %arg2: i32) -> (i32, i32) {
    %c0_i32 = arith.constant 0 : i32
    return %arg0, %arg1 : i32, i32
  }
}

module attributes {stable_mosaic.version = 11 : i64} {
  func.func @_mlp_tail_kernel(%arg0: i32, %arg1: memref<2x512xf32, #tpu.memory_space<vmem>>, %arg2: memref<512x128xbf16, #tpu.memory_space<vmem>>, %arg3: memref<1x128xf32, #tpu.memory_space<vmem>>, %arg4: memref<128x1xbf16, #tpu.memory_space<vmem>>, %arg5: memref<1x1xf32, #tpu.memory_space<vmem>>, %arg6: memref<2x1xf32, #tpu.memory_space<vmem>>) attributes {dimension_semantics = [#tpu.dimension_semantics<arbitrary>], iteration_bounds = array<i64: 1>, scalar_prefetch = 0 : i64, scratch_operands = 0 : i64, tpu.core_type = #tpu.core_type<tc>, window_params = [{pipeline_mode = #tpu.pipeline_mode<synchronous>, transform_indices = @transform_0, window_bounds = array<i64: 2, 512>}, {pipeline_mode = #tpu.pipeline_mode<synchronous>, transform_indices = @transform_1, window_bounds = array<i64: 512, 128>}, {pipeline_mode = #tpu.pipeline_mode<synchronous>, transform_indices = @transform_2, window_bounds = array<i64: 1, 128>}, {pipeline_mode = #tpu.pipeline_mode<synchronous>, transform_indices = @transform_3, window_bounds = array<i64: 128, 1>}, {pipeline_mode = #tpu.pipeline_mode<synchronous>, transform_indices = @transform_4, window_bounds = array<i64: 1, 1>}, {pipeline_mode = #tpu.pipeline_mode<synchronous>, transform_indices = @transform_5, window_bounds = array<i64: 2, 1>}]} {
    %c0 = arith.constant 0 : index
    %c0_0 = arith.constant 0 : index
    %0 = vector.load %arg1[%c0, %c0_0] : memref<2x512xf32, #tpu.memory_space<vmem>>, vector<2x512xf32>
    %1 = arith.truncf %0 : vector<2x512xf32> to vector<2x512xbf16>
    %c0_1 = arith.constant 0 : index
    %c0_2 = arith.constant 0 : index
    %2 = vector.load %arg2[%c0_1, %c0_2] : memref<512x128xbf16, #tpu.memory_space<vmem>>, vector<512x128xbf16>
    %cst = arith.constant dense<0.000000e+00> : vector<2x128xf32>
    %3 = tpu.matmul %1, %2, %cst {dimension_numbers = #tpu.dot_dimension_numbers<[1], [0], [0], [1], [0, 0, 1, 1], [], []>} : vector<2x512xbf16>, vector<512x128xbf16>, vector<2x128xf32> -> vector<2x128xf32>
    %c0_3 = arith.constant 0 : index
    %c0_4 = arith.constant 0 : index
    %4 = vector.load %arg3[%c0_3, %c0_4] : memref<1x128xf32, #tpu.memory_space<vmem>>, vector<1x128xf32>
    %5 = vector.broadcast %4 : vector<1x128xf32> to vector<2x128xf32>
    %6 = arith.addf %3, %5 : vector<2x128xf32>
    %cst_5 = arith.constant 0.000000e+00 : f32
    %7 = vector.broadcast %cst_5 : f32 to vector<2x128xf32>
    %8 = arith.maximumf %6, %7 : vector<2x128xf32>
    %c0_6 = arith.constant 0 : index
    %c0_7 = arith.constant 0 : index
    %9 = vector.load %arg4[%c0_6, %c0_7] : memref<128x1xbf16, #tpu.memory_space<vmem>>, vector<128x1xbf16>
    %10 = arith.extf %9 : vector<128x1xbf16> to vector<128x1xf32>
    %cst_8 = arith.constant dense<0.000000e+00> : vector<2x1xf32>
    %11 = tpu.matmul %8, %10, %cst_8 {dimension_numbers = #tpu.dot_dimension_numbers<[1], [0], [0], [1], [0, 0, 1, 1], [], []>} : vector<2x128xf32>, vector<128x1xf32>, vector<2x1xf32> -> vector<2x1xf32>
    %c0_9 = arith.constant 0 : index
    %c0_10 = arith.constant 0 : index
    %12 = vector.load %arg5[%c0_9, %c0_10] : memref<1x1xf32, #tpu.memory_space<vmem>>, vector<1x1xf32>
    %13 = vector.broadcast %12 : vector<1x1xf32> to vector<2x1xf32>
    %14 = arith.addf %11, %13 : vector<2x1xf32>
    %15 = arith.negf %14 : vector<2x1xf32>
    %16 = math.exp %15 : vector<2x1xf32>
    %cst_11 = arith.constant 1.000000e+00 : f32
    %17 = vector.broadcast %cst_11 : f32 to vector<2x1xf32>
    %18 = arith.addf %17, %16 : vector<2x1xf32>
    %19 = arith.divf %17, %18 : vector<2x1xf32>
    %c0_12 = arith.constant 0 : index
    %c0_13 = arith.constant 0 : index
    %20 = vector.load %arg6[%c0_12, %c0_13] : memref<2x1xf32, #tpu.memory_space<vmem>>, vector<2x1xf32>
    tpu.vector_store %arg6[%c0_12, %c0_13], %19 {strides = array<i32>} : memref<2x1xf32, #tpu.memory_space<vmem>>, vector<2x1xf32>,
    return
  }
  func.func @transform_0(%arg0: i32) -> (i32, i32) {
    %c0_i32 = arith.constant 0 : i32
    %c0_i32_0 = arith.constant 0 : i32
    %c0_i32_1 = arith.constant 0 : i32
    return %c0_i32, %c0_i32_0 : i32, i32
  }
  func.func @transform_1(%arg0: i32) -> (i32, i32) {
    %c0_i32 = arith.constant 0 : i32
    %c0_i32_0 = arith.constant 0 : i32
    %c0_i32_1 = arith.constant 0 : i32
    return %c0_i32, %c0_i32_0 : i32, i32
  }
  func.func @transform_2(%arg0: i32) -> (i32, i32) {
    %c0_i32 = arith.constant 0 : i32
    %c0_i32_0 = arith.constant 0 : i32
    %c0_i32_1 = arith.constant 0 : i32
    return %c0_i32, %c0_i32_0 : i32, i32
  }
  func.func @transform_3(%arg0: i32) -> (i32, i32) {
    %c0_i32 = arith.constant 0 : i32
    %c0_i32_0 = arith.constant 0 : i32
    %c0_i32_1 = arith.constant 0 : i32
    return %c0_i32, %c0_i32_0 : i32, i32
  }
  func.func @transform_4(%arg0: i32) -> (i32, i32) {
    %c0_i32 = arith.constant 0 : i32
    %c0_i32_0 = arith.constant 0 : i32
    %c0_i32_1 = arith.constant 0 : i32
    return %c0_i32, %c0_i32_0 : i32, i32
  }
  func.func @transform_5(%arg0: i32) -> (i32, i32) {
    %c0_i32 = arith.constant 0 : i32
    %c0_i32_0 = arith.constant 0 : i32
    %c0_i32_1 = arith.constant 0 : i32
    return %c0_i32, %c0_i32_0 : i32, i32
  }
}

</mosaic_0001>

<llo_original>
// kernel: vgg_classifier_forward.3
$region0: #{vgg_classifier_forward.3}
  #allocation0 [shape = 'u32[]', space=smem, size = 0x4, offset = 0x4, fixed_abs, tag = 'smem constant byte address 0x4 - core index']
  #allocation1 [shape = 'u32[144,128]{1,0:T(1,128)}', space=vmem, size = 0x12000, scoped, tag = 'internal scratch']
  #allocation2 [shape = 'f32[1,1]{1,0:T(1,128)S(1)}', space=vmem, size = 0x200, scoped, tag = 'scoped memory for vgg_classifier_forward.3']
  %s0 = inlined_call_operand.vmem [shape: f32[2,512], index: 0, kind: input, shape index: {}]
  %s1 = inlined_call_operand.vmem [shape: bf16[512,128], index: 1, kind: input, shape index: {}]
  %s2 = inlined_call_operand.vmem [shape: f32[1,128], index: 2, kind: input, shape index: {}]
  %s3 = inlined_call_operand.vmem [shape: bf16[128,1], index: 3, kind: input, shape index: {}]
  %s4 = inlined_call_operand.<no memory space> [shape: f32[1,1], index: 4, kind: input, shape index: {}]
  %s5 = inlined_call_operand.vmem [shape: f32[2,1], index: 5, kind: output, shape index: {}]
  %s6 = sld [smem:[#allocation0]]
  $region30: #{vgg_classifier_forward.3} parent=0
    _
  %s8 = ssub.s32 1, %s6
  %s9 = scalar_select 0, %s8, %s6
  %v10 = vstv %s4
  %11 = vst [vmem:[#allocation2] sm:$0x1] %v10
  // Predicated region
  $region2: #{vgg_classifier_forward.3} parent=0 // pred_check
    _
  $region3: #{vgg_classifier_forward.3} parent=0 // pred_check_branch
    %13 = sbr.rel (0) target = $region5
  $region4: #{vgg_classifier_forward.3} parent=0 // pred_region
    _
  $region5: #{vgg_classifier_forward.3} parent=0 // pred_fallthru
    _
  // Predicated region
  $region6: #{vgg_classifier_forward.3} parent=0 // pred_check
    _
  $region7: #{vgg_classifier_forward.3} parent=0 // pred_check_branch
    %15 = sbr.rel (0) target = $region9
  $region8: #{vgg_classifier_forward.3} parent=0 // pred_region
    _
  $region9: #{vgg_classifier_forward.3} parent=0 // pred_fallthru
    _
  // Predicated region
  $region10: #{vgg_classifier_forward.3} parent=0 // pred_check
    _
  $region11: #{vgg_classifier_forward.3} parent=0 // pred_check_branch
    %17 = sbr.rel (0) target = $region13
  $region12: #{vgg_classifier_forward.3} parent=0 // pred_region
    _
  $region13: #{vgg_classifier_forward.3} parent=0 // pred_fallthru
    _
  // Predicated region
  $region14: #{vgg_classifier_forward.3} parent=0 // pred_check
    _
  $region15: #{vgg_classifier_forward.3} parent=0 // pred_check_branch
    %19 = sbr.rel (0) target = $region17
  $region16: #{vgg_classifier_forward.3} parent=0 // pred_region
    _
  $region17: #{vgg_classifier_forward.3} parent=0 // pred_fallthru
    _
  // Predicated region
  $region18: #{vgg_classifier_forward.3} parent=0 // pred_check
    _
  $region19: #{vgg_classifier_forward.3} parent=0 // pred_check_branch
    %21 = sbr.rel (0) target = $region21
  $region20: #{vgg_classifier_forward.3} parent=0 // pred_region
    _
  $region21: #{vgg_classifier_forward.3} parent=0 // pred_fallthru
    _
  %v23 = vld [vmem:[%s0] sm:$0xff]
  %v25 = vcombine.high %v23, %v23
  %v27 = vunpack.c.l.s4 1983009808
  %v28 = vunpack.c.0.s8 %v27
  %v29 = vlaneseq
  %v30 = vshrl.u32 %v29, 7
  %v31 = vsub.s32 %v28, %v30
  %v32 = vrot.slane %v23, %v31
  %v34 = vunpack.c.l.s4 1983009808
  %v35 = vunpack.c.0.s8 %v34
  %v36 = vlaneseq
  %v37 = vshrl.u32 %v36, 7
  %v38 = vsub.s32 %v35, %v37
  %v39 = vrot.slane %v25, %v38
  %v40 = vcombine.high %v32, %v32
  %v41 = vcombine.high %v39, %v39
  %v46 = vpack.c.bf16 %v32, %v32
  %v47 = vpack.c.bf16 %v40, %v40
  %v48 = vpack.c.bf16 %v39, %v39
  %v49 = vpack.c.bf16 %v41, %v41
  %v50 = vld [vmem:[%s1] sm:$0xf]
  %v51 = vld [vmem:[%s1 + $0x4] sm:$0xf]
  %v52 = vld [vmem:[%s1 + $0x8] sm:$0xf]
  %v53 = vld [vmem:[%s1 + $0xc] sm:$0xf]
  %v54 = vld [vmem:[%s1 + $0x10] sm:$0xf]
  %v55 = vld [vmem:[%s1 + $0x14] sm:$0xf]
  %v56 = vld [vmem:[%s1 + $0x18] sm:$0xf]
  %v57 = vld [vmem:[%s1 + $0x1c] sm:$0xf]
  %v58 = vld [vmem:[%s1 + $0x20] sm:$0xf]
  %v59 = vld [vmem:[%s1 + $0x24] sm:$0xf]
  %v60 = vld [vmem:[%s1 + $0x28] sm:$0xf]
  %v61 = vld [vmem:[%s1 + $0x2c] sm:$0xf]
  %v62 = vld [vmem:[%s1 + $0x30] sm:$0xf]
  %v63 = vld [vmem:[%s1 + $0x34] sm:$0xf]
  %v64 = vld [vmem:[%s1 + $0x38] sm:$0xf]
  %v65 = vld [vmem:[%s1 + $0x3c] sm:$0xf]
  %v66 = vld [vmem:[%s1 + $0x40] sm:$0xf]
  %v67 = vld [vmem:[%s1 + $0x44] sm:$0xf]
  %v68 = vld [vmem:[%s1 + $0x48] sm:$0xf]
  %v69 = vld [vmem:[%s1 + $0x4c] sm:$0xf]
  %v70 = vld [vmem:[%s1 + $0x50] sm:$0xf]
  %v71 = vld [vmem:[%s1 + $0x54] sm:$0xf]
  %v72 = vld [vmem:[%s1 + $0x58] sm:$0xf]
  %v73 = vld [vmem:[%s1 + $0x5c] sm:$0xf]
  %v74 = vld [vmem:[%s1 + $0x60] sm:$0xf]
  %v75 = vld [vmem:[%s1 + $0x64] sm:$0xf]
  %v76 = vld [vmem:[%s1 + $0x68] sm:$0xf]
  %v77 = vld [vmem:[%s1 + $0x6c] sm:$0xf]
  %v78 = vld [vmem:[%s1 + $0x70] sm:$0xf]
  %v79 = vld [vmem:[%s1 + $0x74] sm:$0xf]
  %v80 = vld [vmem:[%s1 + $0x78] sm:$0xf]
  %v81 = vld [vmem:[%s1 + $0x7c] sm:$0xf]
  %v82 = vld [vmem:[%s1 + $0x80] sm:$0xf]
  %v83 = vld [vmem:[%s1 + $0x84] sm:$0xf]
  %v84 = vld [vmem:[%s1 + $0x88] sm:$0xf]
  %v85 = vld [vmem:[%s1 + $0x8c] sm:$0xf]
  %v86 = vld [vmem:[%s1 + $0x90] sm:$0xf]
  %v87 = vld [vmem:[%s1 + $0x94] sm:$0xf]
  %v88 = vld [vmem:[%s1 + $0x98] sm:$0xf]
  %v89 = vld [vmem:[%s1 + $0x9c] sm:$0xf]
  %v90 = vld [vmem:[%s1 + $0xa0] sm:$0xf]
  %v91 = vld [vmem:[%s1 + $0xa4] sm:$0xf]
  %v92 = vld [vmem:[%s1 + $0xa8] sm:$0xf]
  %v93 = vld [vmem:[%s1 + $0xac] sm:$0xf]
  %v94 = vld [vmem:[%s1 + $0xb0] sm:$0xf]
  %v95 = vld [vmem:[%s1 + $0xb4] sm:$0xf]
  %v96 = vld [vmem:[%s1 + $0xb8] sm:$0xf]
  %v97 = vld [vmem:[%s1 + $0xbc] sm:$0xf]
  %v98 = vld [vmem:[%s1 + $0xc0] sm:$0xf]
  %v99 = vld [vmem:[%s1 + $0xc4] sm:$0xf]
  %v100 = vld [vmem:[%s1 + $0xc8] sm:$0xf]
  %v101 = vld [vmem:[%s1 + $0xcc] sm:$0xf]
  %v102 = vld [vmem:[%s1 + $0xd0] sm:$0xf]
  %v103 = vld [vmem:[%s1 + $0xd4] sm:$0xf]
  %v104 = vld [vmem:[%s1 + $0xd8] sm:$0xf]
  %v105 = vld [vmem:[%s1 + $0xdc] sm:$0xf]
  %v106 = vld [vmem:[%s1 + $0xe0] sm:$0xf]
  %v107 = vld [vmem:[%s1 + $0xe4] sm:$0xf]
  %v108 = vld [vmem:[%s1 + $0xe8] sm:$0xf]
  %v109 = vld [vmem:[%s1 + $0xec] sm:$0xf]
  %v110 = vld [vmem:[%s1 + $0xf0] sm:$0xf]
  %v111 = vld [vmem:[%s1 + $0xf4] sm:$0xf]
  %v112 = vld [vmem:[%s1 + $0xf8] sm:$0xf]
  %v113 = vld [vmem:[%s1 + $0xfc] sm:$0xf]
  %v114 = vld [vmem:[%s2] sm:$0x1]
  %v116 = vlaneseq
  %v117 = vshrl.u32 %v116, 7
  %v118 = vsub.s32 0, %v117
  %v119 = vrot.slane %v114, %v118
  %v185 = vunpack.c.l.b16 %v50
  %v186 = vunpack.c.l.b16 %v51
  %v187 = vunpack.c.l.b16 %v52
  %v188 = vunpack.c.l.b16 %v53
  %v189 = vunpack.c.l.b16 %v54
  %v190 = vunpack.c.l.b16 %v55
  %v191 = vunpack.c.l.b16 %v56
  %v192 = vunpack.c.l.b16 %v57
  %v193 = vunpack.c.l.b16 %v58
  %v194 = vunpack.c.l.b16 %v59
  %v195 = vunpack.c.l.b16 %v60
  %v196 = vunpack.c.l.b16 %v61
  %v197 = vunpack.c.l.b16 %v62
  %v198 = vunpack.c.l.b16 %v63
  %v199 = vunpack.c.l.b16 %v64
  %v200 = vunpack.c.l.b16 %v65
  %v201 = vunpack.c.l.b16 %v66
  %v202 = vunpack.c.l.b16 %v67
  %v203 = vunpack.c.l.b16 %v68
  %v204 = vunpack.c.l.b16 %v69
  %v205 = vunpack.c.l.b16 %v70
  %v206 = vunpack.c.l.b16 %v71
  %v207 = vunpack.c.l.b16 %v72
  %v208 = vunpack.c.l.b16 %v73
  %v209 = vunpack.c.l.b16 %v74
  %v210 = vunpack.c.l.b16 %v75
  %v211 = vunpack.c.l.b16 %v76
  %v212 = vunpack.c.l.b16 %v77
  %v213 = vunpack.c.l.b16 %v78
  %v214 = vunpack.c.l.b16 %v79
  %v215 = vunpack.c.l.b16 %v80
  %v216 = vunpack.c.l.b16 %v81
  %v217 = vunpack.c.l.b16 %v82
  %v218 = vunpack.c.l.b16 %v83
  %v219 = vunpack.c.l.b16 %v84
  %v220 = vunpack.c.l.b16 %v85
  %v221 = vunpack.c.l.b16 %v86
  %v222 = vunpack.c.l.b16 %v87
  %v223 = vunpack.c.l.b16 %v88
  %v224 = vunpack.c.l.b16 %v89
  %v225 = vunpack.c.l.b16 %v90
  %v226 = vunpack.c.l.b16 %v91
  %v227 = vunpack.c.l.b16 %v92
  %v228 = vunpack.c.l.b16 %v93
  %v229 = vunpack.c.l.b16 %v94
  %v230 = vunpack.c.l.b16 %v95
  %v231 = vunpack.c.l.b16 %v96
  %v232 = vunpack.c.l.b16 %v97
  %v233 = vunpack.c.l.b16 %v98
  %v234 = vunpack.c.l.b16 %v99
  %v235 = vunpack.c.l.b16 %v100
  %v236 = vunpack.c.l.b16 %v101
  %v237 = vunpack.c.l.b16 %v102
  %v238 = vunpack.c.l.b16 %v103
  %v239 = vunpack.c.l.b16 %v104
  %v240 = vunpack.c.l.b16 %v105
  %v241 = vunpack.c.l.b16 %v106
  %v242 = vunpack.c.l.b16 %v107
  %v243 = vunpack.c.l.b16 %v108
  %v244 = vunpack.c.l.b16 %v109
  %v245 = vunpack.c.l.b16 %v110
  %v246 = vunpack.c.l.b16 %v111
  %v247 = vunpack.c.l.b16 %v112
  %v248 = vunpack.c.l.b16 %v113
  %v249 = vpack.c.b16 %v186, %v185
  %v250 = vpack.c.b16 %v188, %v187
  %v251 = vpack.c.b16 %v190, %v189
  %v252 = vpack.c.b16 %v192, %v191
  %v253 = vpack.c.b16 %v194, %v193
  %v254 = vpack.c.b16 %v196, %v195
  %v255 = vpack.c.b16 %v198, %v197
  %v256 = vpack.c.b16 %v200, %v199
  %v257 = vpack.c.b16 %v202, %v201
  %v258 = vpack.c.b16 %v204, %v203
  %v259 = vpack.c.b16 %v206, %v205
  %v260 = vpack.c.b16 %v208, %v207
  %v261 = vpack.c.b16 %v210, %v209
  %v262 = vpack.c.b16 %v212, %v211
  %v263 = vpack.c.b16 %v214, %v213
  %v264 = vpack.c.b16 %v216, %v215
  %v265 = vpack.c.b16 %v218, %v217
  %v266 = vpack.c.b16 %v220, %v219
  %v267 = vpack.c.b16 %v222, %v221
  %v268 = vpack.c.b16 %v224, %v223
  %v269 = vpack.c.b16 %v226, %v225
  %v270 = vpack.c.b16 %v228, %v227
  %v271 = vpack.c.b16 %v230, %v229
  %v272 = vpack.c.b16 %v232, %v231
  %v273 = vpack.c.b16 %v234, %v233
  %v274 = vpack.c.b16 %v236, %v235
  %v275 = vpack.c.b16 %v238, %v237
  %v276 = vpack.c.b16 %v240, %v239
  %v277 = vpack.c.b16 %v242, %v241
  %v278 = vpack.c.b16 %v244, %v243
  %v279 = vpack.c.b16 %v246, %v245
  %v280 = vpack.c.b16 %v248, %v247
  %313 = vmatprep.subr.bf16.mxu0 0
  %314 = vmatpush1.bf16.msra.mxu0 %v249
  %315 = vmatprep.subr.bf16.mxu0 0
  %316 = vmatpush1.bf16.msra.mxu0 %v250
  %317 = vmatprep.subr.bf16.mxu0 0
  %318 = vmatpush1.bf16.msra.mxu0 %v251
  %319 = vmatprep.subr.bf16.mxu0 0
  %320 = vmatpush1.bf16.msra.mxu0 %v252
  %321 = vmatprep.subr.bf16.mxu0 0
  %322 = vmatpush1.bf16.msra.mxu0 %v253
  %323 = vmatprep.subr.bf16.mxu0 0
  %324 = vmatpush1.bf16.msra.mxu0 %v254
  %325 = vmatprep.subr.bf16.mxu0 0
  %326 = vmatpush1.bf16.msra.mxu0 %v255
  %327 = vmatprep.subr.bf16.mxu0 0
  %328 = vmatpush1.bf16.msra.mxu0 %v256
  %329 = vmatprep.subr.bf16.mxu0 0
  %330 = vmatpush1.bf16.msra.mxu0 %v257
  %331 = vmatprep.subr.bf16.mxu0 0
  %332 = vmatpush1.bf16.msra.mxu0 %v258
  %333 = vmatprep.subr.bf16.mxu0 0
  %334 = vmatpush1.bf16.msra.mxu0 %v259
  %335 = vmatprep.subr.bf16.mxu0 0
  %336 = vmatpush1.bf16.msra.mxu0 %v260
  %337 = vmatprep.subr.bf16.mxu0 0
  %338 = vmatpush1.bf16.msra.mxu0 %v261
  %339 = vmatprep.subr.bf16.mxu0 0
  %340 = vmatpush1.bf16.msra.mxu0 %v262
  %341 = vmatprep.subr.bf16.mxu0 0
  %342 = vmatpush1.bf16.msra.mxu0 %v263
  %343 = vmatprep.subr.bf16.mxu0 0
  %344 = vmatpush1.bf16.msra.mxu0 %v264
  %345 = vmatprep.mubr.bf16.mxu0 %v47
  %346 = vmatmul.mubr.bf16.gmra.mrb[0].mxu0 %v46
  %v347 = vpop.f32.mrb[0].mxu0
  %v348 = vadd.f32 %v119, %v347
  %v349 = vpop.f32.mrb[0].mxu0
  %v350 = vpop.f32.mrb[0].mxu0
  %v351 = vpop.f32.mrb[0].mxu0
  %352 = vdwg.mxu0
  %353 = vmatprep.subr.bf16.mxu0 0
  %354 = vmatpush1.bf16.msra.mxu0 %v265
  %355 = vmatprep.subr.bf16.mxu0 0
  %356 = vmatpush1.bf16.msra.mxu0 %v266
  %357 = vmatprep.subr.bf16.mxu0 0
  %358 = vmatpush1.bf16.msra.mxu0 %v267
  %359 = vmatprep.subr.bf16.mxu0 0
  %360 = vmatpush1.bf16.msra.mxu0 %v268
  %361 = vmatprep.subr.bf16.mxu0 0
  %362 = vmatpush1.bf16.msra.mxu0 %v269
  %363 = vmatprep.subr.bf16.mxu0 0
  %364 = vmatpush1.bf16.msra.mxu0 %v270
  %365 = vmatprep.subr.bf16.mxu0 0
  %366 = vmatpush1.bf16.msra.mxu0 %v271
  %367 = vmatprep.subr.bf16.mxu0 0
  %368 = vmatpush1.bf16.msra.mxu0 %v272
  %369 = vmatprep.subr.bf16.mxu0 0
  %370 = vmatpush1.bf16.msra.mxu0 %v273
  %371 = vmatprep.subr.bf16.mxu0 0
  %372 = vmatpush1.bf16.msra.mxu0 %v274
  %373 = vmatprep.subr.bf16.mxu0 0
  %374 = vmatpush1.bf16.msra.mxu0 %v275
  %375 = vmatprep.subr.bf16.mxu0 0
  %376 = vmatpush1.bf16.msra.mxu0 %v276
  %377 = vmatprep.subr.bf16.mxu0 0
  %378 = vmatpush1.bf16.msra.mxu0 %v277
  %379 = vmatprep.subr.bf16.mxu0 0
  %380 = vmatpush1.bf16.msra.mxu0 %v278
  %381 = vmatprep.subr.bf16.mxu0 0
  %382 = vmatpush1.bf16.msra.mxu0 %v279
  %383 = vmatprep.subr.bf16.mxu0 0
  %384 = vmatpush1.bf16.msra.mxu0 %v280
  %385 = vmatprep.mubr.bf16.mxu0 %v49
  %386 = vmatmul.mubr.bf16.gmra.mrb[0].mxu0 %v48
  %v387 = vpop.f32.mrb[0].mxu0
  %v388 = vadd.f32 %v348, %v387
  %v389 = vpop.f32.mrb[0].mxu0
  %v390 = vpop.f32.mrb[0].mxu0
  %v391 = vpop.f32.mrb[0].mxu0
  %392 = vdwg.mxu0
  %v393 = vmax.f32 %v388, 0.0
  %v394 = vld [vmem:[%s3] sm:$0xf]
  %v395 = vld [vmem:[%s3 + $0x4] sm:$0xf]
  %v396 = vld [vmem:[%s3 + $0x8] sm:$0xf]
  %v397 = vld [vmem:[%s3 + $0xc] sm:$0xf]
  %v398 = vld [vmem:[%s3 + $0x10] sm:$0xf]
  %v399 = vld [vmem:[%s3 + $0x14] sm:$0xf]
  %v400 = vld [vmem:[%s3 + $0x18] sm:$0xf]
  %v401 = vld [vmem:[%s3 + $0x1c] sm:$0xf]
  %v402 = vld [vmem:[%s3 + $0x20] sm:$0xf]
  %v403 = vld [vmem:[%s3 + $0x24] sm:$0xf]
  %v404 = vld [vmem:[%s3 + $0x28] sm:$0xf]
  %v405 = vld [vmem:[%s3 + $0x2c] sm:$0xf]
  %v406 = vld [vmem:[%s3 + $0x30] sm:$0xf]
  %v407 = vld [vmem:[%s3 + $0x34] sm:$0xf]
  %v408 = vld [vmem:[%s3 + $0x38] sm:$0xf]
  %v409 = vld [vmem:[%s3 + $0x3c] sm:$0xf]
  %v410 = vunpack.c.l.bf16 %v394
  %v411 = vunpack.c.l.bf16 %v395
  %v412 = vunpack.c.l.bf16 %v396
  %v413 = vunpack.c.l.bf16 %v397
  %v414 = vunpack.c.l.bf16 %v398
  %v415 = vunpack.c.l.bf16 %v399
  %v416 = vunpack.c.l.bf16 %v400
  %v417 = vunpack.c.l.bf16 %v401
  %v418 = vunpack.c.l.bf16 %v402
  %v419 = vunpack.c.l.bf16 %v403
  %v420 = vunpack.c.l.bf16 %v404
  %v421 = vunpack.c.l.bf16 %v405
  %v422 = vunpack.c.l.bf16 %v406
  %v423 = vunpack.c.l.bf16 %v407
  %v424 = vunpack.c.l.bf16 %v408
  %v425 = vunpack.c.l.bf16 %v409
  %v426 = vld [vmem:[#allocation2] sm:$0x1]
  %v428 = vlaneseq
  %v429 = vshrl.u32 %v428, 7
  %v430 = vsub.s32 0, %v429
  %v431 = vrot.slane %v426, %v430
  %433 = vmatprep.subr.mxu0 0.0
  %434 = vmatpush1.msra.mxu0 %v410
  %435 = vmatprep.subr.mxu0 0.0
  %436 = vmatpush1.msra.mxu0 %v411
  %437 = vmatprep.subr.mxu0 0.0
  %438 = vmatpush1.msra.mxu0 %v412
  %439 = vmatprep.subr.mxu0 0.0
  %440 = vmatpush1.msra.mxu0 %v413
  %441 = vmatprep.subr.mxu0 0.0
  %442 = vmatpush1.msra.mxu0 %v414
  %443 = vmatprep.subr.mxu0 0.0
  %444 = vmatpush1.msra.mxu0 %v415
  %445 = vmatprep.subr.mxu0 0.0
  %446 = vmatpush1.msra.mxu0 %v416
  %447 = vmatprep.subr.mxu0 0.0
  %448 = vmatpush1.msra.mxu0 %v417
  %449 = vmatprep.subr.mxu0 0.0
  %450 = vmatpush1.msra.mxu0 %v418
  %451 = vmatprep.subr.mxu0 0.0
  %452 = vmatpush1.msra.mxu0 %v419
  %453 = vmatprep.subr.mxu0 0.0
  %454 = vmatpush1.msra.mxu0 %v420
  %455 = vmatprep.subr.mxu0 0.0
  %456 = vmatpush1.msra.mxu0 %v421
  %457 = vmatprep.subr.mxu0 0.0
  %458 = vmatpush1.msra.mxu0 %v422
  %459 = vmatprep.subr.mxu0 0.0
  %460 = vmatpush1.msra.mxu0 %v423
  %461 = vmatprep.subr.mxu0 0.0
  %462 = vmatpush1.msra.mxu0 %v424
  %463 = vmatprep.subr.mxu0 0.0
  %464 = vmatpush1.msra.mxu0 %v425
  %465 = vmatprep.subr.mxu0 0.0
  %466 = vmatpush1.msra.mxu0 0.0
  %467 = vmatprep.subr.mxu0 0.0
  %468 = vmatpush1.msra.mxu0 0.0
  %469 = vmatprep.subr.mxu0 0.0
  %470 = vmatpush1.msra.mxu0 0.0
  %471 = vmatprep.subr.mxu0 0.0
  %472 = vmatpush1.msra.mxu0 0.0
  %473 = vmatprep.subr.mxu0 0.0
  %474 = vmatpush1.msra.mxu0 0.0
  %475 = vmatprep.subr.mxu0 0.0
  %476 = vmatpush1.msra.mxu0 0.0
  %477 = vmatprep.subr.mxu0 0.0
  %478 = vmatpush1.msra.mxu0 0.0
  %479 = vmatprep.subr.mxu0 0.0
  %480 = vmatpush1.msra.mxu0 0.0
  %481 = vmatprep.subr.mxu0 0.0
  %482 = vmatpush1.msra.mxu0 0.0
  %483 = vmatprep.subr.mxu0 0.0
  %484 = vmatpush1.msra.mxu0 0.0
  %485 = vmatprep.subr.mxu0 0.0
  %486 = vmatpush1.msra.mxu0 0.0
  %487 = vmatprep.subr.mxu0 0.0
  %488 = vmatpush1.msra.mxu0 0.0
  %489 = vmatprep.subr.mxu0 0.0
  %490 = vmatpush1.msra.mxu0 0.0
  %491 = vmatprep.subr.mxu0 0.0
  %492 = vmatpush1.msra.mxu0 0.0
  %493 = vmatprep.subr.mxu0 0.0
  %494 = vmatpush1.msra.mxu0 0.0
  %495 = vmatprep.subr.mxu0 0.0
  %496 = vmatpush1.msra.mxu0 0.0
  %497 = vmatprep.mubr.f32.mxu0 0.0
  %498 = vmatmul.mubr.f32.gmra.mrb[0].mxu0 %v393
  %v499 = vpop.f32.mrb[0].mxu0
  %v500 = vadd.f32 %v431, %v499
  %v501 = vpop.f32.mrb[0].mxu0
  %502 = vdwg.mxu0
  %v503 = vxor.u32 %v500, 2147483648
  %v504 = vmul.f32 %v503, 1.442695
  %v505 = vpow.pop %v504
  %v506 = vadd.f32 %v505, 1.0
  %v507 = vrcp.pop %v506
  %v508 = vmul.f32 1.0, %v507
  %vm509 = vcmask 1024
  %510 = vst.msk [vmem:[%s5] sm:$0x3] %vm509, %v508
  // Predicated region
  $region22: #{vgg_classifier_forward.3} parent=0 // pred_check
    _
  $region23: #{vgg_classifier_forward.3} parent=0 // pred_check_branch
    %512 = sbr.rel (0) target = $region25
  $region24: #{vgg_classifier_forward.3} parent=0 // pred_region
    _
  $region25: #{vgg_classifier_forward.3} parent=0 // pred_fallthru
    _
  // Predicated region
  $region26: #{vgg_classifier_forward.3} parent=0 // pred_check
    _
  $region27: #{vgg_classifier_forward.3} parent=0 // pred_check_branch
    %514 = sbr.rel (0) target = $region29
  $region28: #{vgg_classifier_forward.3} parent=0 // pred_region
    _
  $region29: #{vgg_classifier_forward.3} parent=0 // pred_fallthru
    _

// kernel: vgg_classifier_forward.2
$region0: #{vgg_classifier_forward.2}
  #allocation0 [shape = 'u32[]', space=smem, size = 0x4, offset = 0x4, fixed_abs, tag = 'smem constant byte address 0x4 - core index']
  #allocation1 [shape = 'u32[144,128]{1,0:T(1,128)}', space=vmem, size = 0x12000, scoped, tag = 'internal scratch']
  #allocation2 [shape = 'f32[2,512]{1,0:T(2,128)}', space=vmem, size = 0x1000, scoped, tag = 'scratch operand']
  %s0 = inlined_call_operand.vmem [shape: bf16[2,6272], index: 0, kind: input, shape index: {}]
  %s1 = inlined_call_operand.hbm [shape: bf16[6272,512], index: 1, kind: input, shape index: {}]
  %s2 = inlined_call_operand.hbm [shape: f32[1,512], index: 2, kind: input, shape index: {}]
  %s3 = inlined_call_operand.vmem [shape: f32[2,512], index: 3, kind: output, shape index: {}]
  %s4 = sld [smem:[#allocation0]]
  $region61: #{vgg_classifier_forward.2} parent=0
    _
  %s6 = ssub.s32 1, %s4
  %s7 = scalar_select 0, %s6, %s4
  $region1: #{vgg_classifier_forward.2} parent=0
    #allocation3 [shape = 'u8[1835008]{0}', space=vmem, size = 0x1c0000, scoped, tag = 'input window, operand 1']
    #allocation4 [shape = 's32[2]{0}', space=sflag, size = 0x8, scoped, tag = 'scoped memory for vgg_classifier_forward.2']
    #allocation5 [shape = 'u8[2048]{0}', space=vmem, size = 0x800, scoped, tag = 'input window, operand 2, single buffered']
    #allocation6 [shape = 's32[1]{0}', space=sflag, size = 0x4, scoped, tag = 'scoped memory for vgg_classifier_forward.2']
    %8 = vsyncpa [#allocation4], 0
    %s9 = scalar_lea.sflag [#allocation4], 1
    %10 = vsyncpa %s9, 0
    %11 = vsyncpa [#allocation6], 0
    loop: start=0, step=1, limit=9
    $region2: #{vgg_classifier_forward.2} parent=1 // loop_pre_header
      _
    $region3: #{vgg_classifier_forward.2} parent=1 // loop_header
      %s13 = sphi 0, %s17
      %p14 = scmp.ge.s32.totalorder %s13, 9
      %s20 = sphi 0, %s39
      %s21 = sphi 0, %s35
      %s22 = sphi 0, %s31
      %s23 = sphi 0, %s20
      %s24 = sphi 0, %s21
      %s25 = sphi 0, %s22
      %s26 = sphi 0, %s23
      %s27 = sphi 0, %s24
      %s28 = sphi 0, %s25
      %s44 = sphi 0, %s46
      %s47 = sphi 0, %s44
      %s48 = sphi 0, %s47
      %s64 = sphi 0, %s48
      %s72 = sphi 0, %s74
      %s75 = sphi 0, %s72
      %s76 = sphi 0, %s75
      %s92 = sphi 0, %s76
      %s98 = sphi 0, %s100
      %s101 = sphi 0, %s98
      %s102 = sphi 0, %s101
      %s118 = sphi 0, %s102
      %s126 = sphi 0, %s128
      %s129 = sphi 0, %s126
      %s130 = sphi 0, %s129
      %s146 = sphi 0, %s130
    $region4: #{vgg_classifier_forward.2} parent=1 // loop_header_branch
      %16 = sbr.rel (%p14) target = $region8
    $region5: #{vgg_classifier_forward.2} parent=1 // loop_body
      %s18 = ssub.s32 %s13, 1
      %s19 = ssub.s32 %s13, 2
      %s29 = sadd.s32 1, %s22
      %p30 = scmp.ge.s32.totalorder %s29, 7
      %s31 = scalar_select %p30, 0, %s29
      %s32 = sadd.s32 1, %s21
      %s33 = scalar_select %p30, %s32, %s21
      %p34 = scmp.ge.s32.totalorder %s33, 1
      %s35 = scalar_select %p34, 0, %s33
      %s36 = sadd.s32 1, %s20
      %s37 = scalar_select %p34, %s36, %s20
      %p38 = scmp.ge.s32.totalorder %s37, 1
      %s39 = scalar_select %p38, 0, %s37
      %s40 = ssub.s32 %s20, %s39
      %s41 = ssub.s32 %s22, %s31
      %s42 = sor.u32 %s40, %s41
      %p43 = scmp.eq.s32.totalorder %s42, 0
      %s45 = sadd.s32 %s44, 1
      %s46 = scalar_select %p43, %s44, %s45
      %p49 = pneg %p43
      %p50 = scmp.eq.s32.totalorder %s13, 6
      %p51 = por %p49, %p50
      %p52 = scmp.ne.s32.totalorder %s44, %s47
      %p53 = scmp.eq.s32.totalorder %s13, 0
      %p54 = por %p52, %p53
      %p55 = scmp.ne.s32.totalorder %s44, %s47
      %p56 = scmp.eq.s32.totalorder %s18, 6
      %p57 = por %p55, %p56
      %p58 = scmp.ne.s32.totalorder %s47, %s48
      %p59 = scmp.eq.s32.totalorder %s18, 0
      %p60 = por %p58, %p59
      %p61 = scmp.ne.s32.totalorder %s47, %s48
      %p62 = scmp.eq.s32.totalorder %s19, 6
      %p63 = por %p61, %p62
      %p65 = scmp.ne.s32.totalorder %s48, %s64
      %p66 = scmp.eq.s32.totalorder %s19, 0
      %p67 = por %p65, %p66
      %s68 = ssub.s32 %s22, %s31
      %s69 = ssub.s32 %s21, %s35
      %s70 = sor.u32 %s68, %s69
      %p71 = scmp.eq.s32.totalorder %s70, 0
      %s73 = sadd.s32 %s72, 1
      %s74 = scalar_select %p71, %s72, %s73
      %p77 = pneg %p71
      %p78 = scmp.eq.s32.totalorder %s13, 6
      %p79 = por %p77, %p78
      %p80 = scmp.ne.s32.totalorder %s72, %s75
      %p81 = scmp.eq.s32.totalorder %s13, 0
      %p82 = por %p80, %p81
      %p83 = scmp.ne.s32.totalorder %s72, %s75
      %p84 = scmp.eq.s32.totalorder %s18, 6
      %p85 = por %p83, %p84
      %p86 = scmp.ne.s32.totalorder %s75, %s76
      %p87 = scmp.eq.s32.totalorder %s18, 0
      %p88 = por %p86, %p87
      %p89 = scmp.ne.s32.totalorder %s75, %s76
      %p90 = scmp.eq.s32.totalorder %s19, 6
      %p91 = por %p89, %p90
      %p93 = scmp.ne.s32.totalorder %s76, %s92
      %p94 = scmp.eq.s32.totalorder %s19, 0
      %p95 = por %p93, %p94
      %s96 = ssub.s32 %s21, %s35
      %p97 = scmp.eq.s32.totalorder %s96, 0
      %s99 = sadd.s32 %s98, 1
      %s100 = scalar_select %p97, %s98, %s99
      %p103 = pneg %p97
      %p104 = scmp.eq.s32.totalorder %s13, 6
      %p105 = por %p103, %p104
      %p106 = scmp.ne.s32.totalorder %s98, %s101
      %p107 = scmp.eq.s32.totalorder %s13, 0
      %p108 = por %p106, %p107
      %p109 = scmp.ne.s32.totalorder %s98, %s101
      %p110 = scmp.eq.s32.totalorder %s18, 6
      %p111 = por %p109, %p110
      %p112 = scmp.ne.s32.totalorder %s101, %s102
      %p113 = scmp.eq.s32.totalorder %s18, 0
      %p114 = por %p112, %p113
      %p115 = scmp.ne.s32.totalorder %s101, %s102
      %p116 = scmp.eq.s32.totalorder %s19, 6
      %p117 = por %p115, %p116
      %p119 = scmp.ne.s32.totalorder %s102, %s118
      %p120 = scmp.eq.s32.totalorder %s19, 0
      %p121 = por %p119, %p120
      %s122 = ssub.s32 %s20, %s39
      %s123 = ssub.s32 %s21, %s35
      %s124 = sor.u32 %s122, %s123
      %p125 = scmp.eq.s32.totalorder %s124, 0
      %s127 = sadd.s32 %s126, 1
      %s128 = scalar_select %p125, %s126, %s127
      %p131 = pneg %p125
      %p132 = scmp.eq.s32.totalorder %s13, 6
      %p133 = por %p131, %p132
      %p134 = scmp.ne.s32.totalorder %s126, %s129
      %p135 = scmp.eq.s32.totalorder %s13, 0
      %p136 = por %p134, %p135
      %p137 = scmp.ne.s32.totalorder %s126, %s129
      %p138 = scmp.eq.s32.totalorder %s18, 6
      %p139 = por %p137, %p138
      %p140 = scmp.ne.s32.totalorder %s129, %s130
      %p141 = scmp.eq.s32.totalorder %s18, 0
      %p142 = por %p140, %p141
      %p143 = scmp.ne.s32.totalorder %s129, %s130
      %p144 = scmp.eq.s32.totalorder %s19, 6
      %p145 = por %p143, %p144
      %p147 = scmp.ne.s32.totalorder %s130, %s146
      %p148 = scmp.eq.s32.totalorder %s19, 0
      %p149 = por %p147, %p148
      %p150 = scmp.le.s32.totalorder 1, %s13
      %p151 = scmp.lt.s32.totalorder %s13, 8
      %p152 = pnand %p150, %p151
      %p153 = pneg %p152
      // Predicated region
      $region9: #{vgg_classifier_forward.2} parent=5 // pred_check
        _
      $region10: #{vgg_classifier_forward.2} parent=5 // pred_check_branch
        %155 = sbr.rel (%p152) target = $region12
      $region11: #{vgg_classifier_forward.2} parent=5 // pred_region
        %s156 = ssub.s32 %s13, 1
        // Predicated region
        $region13: #{vgg_classifier_forward.2} parent=11 // pred_check
          %p157 = pneg %p114
        $region14: #{vgg_classifier_forward.2} parent=11 // pred_check_branch
          %159 = sbr.rel (%p157) target = $region16
        $region15: #{vgg_classifier_forward.2} parent=11 // pred_region
          %s160 = smul.u32 4, %s24
          %s162 = ssub.s32 64, 64
          %163 = vsyncadd [#allocation6], %s162
          %s164 = smul.addr %s160, 16
          %s165 = scalar_lea.hbm %s2, %s164
          %s167 = sshll.u32 [#allocation5], 4
          %s168 = int_to_ptr.vmem [resolvable:$true] %s167
          %170 = dma.hbm_to_vmem [thread:$0]  %s165, 64, %s168, [#allocation6]
        $region16: #{vgg_classifier_forward.2} parent=11 // pred_fallthru
          _
      $region12: #{vgg_classifier_forward.2} parent=5 // pred_fallthru
        _
      %p171 = scmp.lt.s32.totalorder %s13, 7
      // Predicated region
      $region17: #{vgg_classifier_forward.2} parent=5 // pred_check
        %p172 = pneg %p171
      $region18: #{vgg_classifier_forward.2} parent=5 // pred_check_branch
        %174 = sbr.rel (%p172) target = $region20
      $region19: #{vgg_classifier_forward.2} parent=5 // pred_region
        // Predicated region
        $region21: #{vgg_classifier_forward.2} parent=19 // pred_check
          %p175 = pneg %p54
        $region22: #{vgg_classifier_forward.2} parent=19 // pred_check_branch
          %177 = sbr.rel (%p175) target = $region24
        $region23: #{vgg_classifier_forward.2} parent=19 // pred_region
          %s178 = smul.u32 7, %s22
          %p179 = scmp.lt.s32.totalorder %s20, 0
          %s180 = scalar_select %p179, %s20, 0
          %p181 = scmp.lt.s32.totalorder %s178, 48
          %s182 = scalar_select %p181, %s178, 48
          %s183 = smul.addr %s180, 49
          %s184 = sadd.s32 %s182, %s183
          %s185 = scalar_lea.vmem %s0, %s184
          %s186 = smul.u32 7, %s22
        $region24: #{vgg_classifier_forward.2} parent=19 // pred_fallthru
          _
        // Predicated region
        $region25: #{vgg_classifier_forward.2} parent=19 // pred_check
          %p187 = pneg %p82
        $region26: #{vgg_classifier_forward.2} parent=19 // pred_check_branch
          %189 = sbr.rel (%p187) target = $region28
        $region27: #{vgg_classifier_forward.2} parent=19 // pred_region
          %s190 = sand.u32 %s72, 1
          %s191 = scalar_lea.sflag [#allocation4], %s190
          %s192 = sand.u32 %s72, 1
          %s193 = smul.addr %s192, 1792
          %s194 = scalar_lea.vmem [#allocation3], %s193
          %s195 = smul.u32 112, %s22
          %s196 = smul.u32 4, %s21
          %s198 = ssub.s32 28672, 28672
          %199 = vsyncadd %s191, %s198
          %s200 = smul.addr %s195, 4
          %s201 = sadd.s32 %s196, %s200
          %s202 = smul.addr %s201, 64
          %s203 = scalar_lea.hbm %s1, %s202
          %s204 = sshll.u32 %s194, 4
          %s205 = int_to_ptr.vmem [resolvable:$true] %s204
          %210 = dma.hbm_to_vmem [thread:$0]  %s203, 28672, %s205, %s191, 256, 256, 16
        $region28: #{vgg_classifier_forward.2} parent=19 // pred_fallthru
          _
      $region20: #{vgg_classifier_forward.2} parent=5 // pred_fallthru
        _
      %p211 = scmp.le.s32.totalorder 1, %s13
      %p212 = scmp.lt.s32.totalorder %s13, 8
      %p213 = pnand %p211, %p212
      %p214 = pneg %p213
      // Predicated region
      $region29: #{vgg_classifier_forward.2} parent=5 // pred_check
        _
      $region30: #{vgg_classifier_forward.2} parent=5 // pred_check_branch
        %216 = sbr.rel (%p213) target = $region32
      $region31: #{vgg_classifier_forward.2} parent=5 // pred_region
        %s217 = ssub.s32 %s13, 1
        %s218 = sand.u32 %s75, 1
        %s219 = scalar_lea.sflag [#allocation4], %s218
        %s220 = sand.u32 %s75, 1
        %s221 = smul.addr %s220, 1792
        %s222 = scalar_lea.vmem [#allocation3], %s221
        // Predicated region
        $region33: #{vgg_classifier_forward.2} parent=31 // pred_check
          %p223 = pneg %p88
        $region34: #{vgg_classifier_forward.2} parent=31 // pred_check_branch
          %225 = sbr.rel (%p223) target = $region36
        $region35: #{vgg_classifier_forward.2} parent=31 // pred_region
          %226 = dma.done %s219, 28672
        $region36: #{vgg_classifier_forward.2} parent=31 // pred_fallthru
          _
        // Predicated region
        $region37: #{vgg_classifier_forward.2} parent=31 // pred_check
          %p227 = pneg %p114
        $region38: #{vgg_classifier_forward.2} parent=31 // pred_check_branch
          %229 = sbr.rel (%p227) target = $region40
        $region39: #{vgg_classifier_forward.2} parent=31 // pred_region
          %230 = dma.done [#allocation6], 64
        $region40: #{vgg_classifier_forward.2} parent=31 // pred_fallthru
          _
        %s231 = smul.u32 7, %s25
        %p232 = scmp.lt.s32.totalorder %s23, 0
        %s233 = scalar_select %p232, %s23, 0
        %p234 = scmp.lt.s32.totalorder %s231, 48
        %s235 = scalar_select %p234, %s231, 48
        %s236 = smul.addr %s233, 49
        %s237 = sadd.s32 %s235, %s236
        %s238 = scalar_lea.vmem %s0, %s237
        %p239 = pneg %p60
        %p240 = pneg %p57
        %s241 = sand.u32 %s75, 1
        %s242 = scalar_lea.sflag [#allocation4], %s241
        %s243 = sand.u32 %s75, 1
        %s244 = smul.addr %s243, 1792
        %s245 = scalar_lea.vmem [#allocation3], %s244
        %p246 = pneg %p88
        %p247 = pneg %p85
        %p248 = pneg %p114
        %p249 = pneg %p111
        %p250 = pneg %p142
        %p251 = pneg %p139
        %s252 = smul.u32 4, %s24
        %p253 = scmp.lt.s32.totalorder %s23, 0
        %s254 = scalar_select %p253, %s23, 0
        %p255 = scmp.lt.s32.totalorder %s252, 3
        %s256 = scalar_select %p255, %s252, 3
        %s257 = smul.addr %s254, 4
        %s258 = sadd.s32 %s256, %s257
        %s259 = smul.addr %s258, 2
        %s260 = scalar_lea.vmem %s3, %s259
        %s261 = smul.u32 7, %s25
        %p262 = scmp.lt.s32.totalorder %s23, 0
        %s263 = scalar_select %p262, %s23, 0
        %p264 = scmp.lt.s32.totalorder %s261, 48
        %s265 = scalar_select %p264, %s261, 48
        %s266 = smul.addr %s263, 49
        %s267 = sadd.s32 %s265, %s266
        %s268 = scalar_lea.vmem %s0, %s267
        %s269 = smul.u32 7, %s25
        %s270 = smul.u32 112, %s25
        %s271 = smul.u32 4, %s24
        %s272 = smul.u32 4, %s24
        %s273 = smul.u32 4, %s24
        %p274 = scmp.lt.s32.totalorder %s23, 0
        %s275 = scalar_select %p274, %s23, 0
        %p276 = scmp.lt.s32.totalorder %s273, 3
        %s277 = scalar_select %p276, %s273, 3
        %s278 = smul.addr %s275, 4
        %s279 = sadd.s32 %s277, %s278
        %s280 = smul.addr %s279, 2
        %s281 = scalar_lea.vmem %s3, %s280
        %s282 = smul.u32 4, %s24
        %p284 = scmp.eq.s32.totalorder %s25, 0
        // Predicated region
        $region41: #{vgg_classifier_forward.2} parent=31 // pred_check
          %p285 = pneg %p284
        $region42: #{vgg_classifier_forward.2} parent=31 // pred_check_branch
          %287 = sbr.rel (%p285) target = $region44
        $region43: #{vgg_classifier_forward.2} parent=31 // pred_region
          %288 = vst [vmem:[#allocation2] sm:$0xff] 0.0
        $region44: #{vgg_classifier_forward.2} parent=31 // pred_fallthru
          _
        %v289 = vld [vmem:[#allocation2] sm:$0xff]
        %v290 = vld [vmem:[%s268] sm:$0x7f]
        %v291 = vld [vmem:[%s222] sm:$0xff]
        %v292 = vld [vmem:[%s222 + $0x8] sm:$0xff]
        %v293 = vld [vmem:[%s222 + $0x10] sm:$0xff]
        %v294 = vld [vmem:[%s222 + $0x18] sm:$0xff]
        %v295 = vld [vmem:[%s222 + $0x20] sm:$0xff]
        %v296 = vld [vmem:[%s222 + $0x28] sm:$0xff]
        %v297 = vld [vmem:[%s222 + $0x30] sm:$0xff]
        %v298 = vld [vmem:[%s222 + $0x38] sm:$0xff]
        %v299 = vld [vmem:[%s222 + $0x40] sm:$0xff]
        %v300 = vld [vmem:[%s222 + $0x48] sm:$0xff]
        %v301 = vld [vmem:[%s222 + $0x50] sm:$0xff]
        %v302 = vld [vmem:[%s222 + $0x58] sm:$0xff]
        %v303 = vld [vmem:[%s222 + $0x60] sm:$0xff]
        %v304 = vld [vmem:[%s222 + $0x68] sm:$0xff]
        %v305 = vld [vmem:[%s222 + $0x70] sm:$0xff]
        %v306 = vld [vmem:[%s222 + $0x78] sm:$0xff]
        %v307 = vld [vmem:[%s222 + $0x80] sm:$0xff]
        %v308 = vld [vmem:[%s222 + $0x88] sm:$0xff]
        %v309 = vld [vmem:[%s222 + $0x90] sm:$0xff]
        %v310 = vld [vmem:[%s222 + $0x98] sm:$0xff]
        %v311 = vld [vmem:[%s222 + $0xa0] sm:$0xff]
        %v312 = vld [vmem:[%s222 + $0xa8] sm:$0xff]
        %v313 = vld [vmem:[%s222 + $0xb0] sm:$0xff]
        %v314 = vld [vmem:[%s222 + $0xb8] sm:$0xff]
        %v315 = vld [vmem:[%s222 + $0xc0] sm:$0xff]
        %v316 = vld [vmem:[%s222 + $0xc8] sm:$0xff]
        %v317 = vld [vmem:[%s222 + $0xd0] sm:$0xff]
        %v318 = vld [vmem:[%s222 + $0xd8] sm:$0xff]
        %v319 = vld [vmem:[%s222 + $0xe0] sm:$0xff]
        %v320 = vld [vmem:[%s222 + $0xe8] sm:$0xff]
        %v321 = vld [vmem:[%s222 + $0xf0] sm:$0xff]
        %v322 = vld [vmem:[%s222 + $0xf8] sm:$0xff]
        %v323 = vld [vmem:[%s222 + $0x100] sm:$0xff]
        %v324 = vld [vmem:[%s222 + $0x108] sm:$0xff]
        %v325 = vld [vmem:[%s222 + $0x110] sm:$0xff]
        %v326 = vld [vmem:[%s222 + $0x118] sm:$0xff]
        %v327 = vld [vmem:[%s222 + $0x120] sm:$0xff]
        %v328 = vld [vmem:[%s222 + $0x128] sm:$0xff]
        %v329 = vld [vmem:[%s222 + $0x130] sm:$0xff]
        %v330 = vld [vmem:[%s222 + $0x138] sm:$0xff]
        %v331 = vld [vmem:[%s222 + $0x140] sm:$0xff]
        %v332 = vld [vmem:[%s222 + $0x148] sm:$0xff]
        %v333 = vld [vmem:[%s222 + $0x150] sm:$0xff]
        %v334 = vld [vmem:[%s222 + $0x158] sm:$0xff]
        %v335 = vld [vmem:[%s222 + $0x160] sm:$0xff]
        %v336 = vld [vmem:[%s222 + $0x168] sm:$0xff]
        %v337 = vld [vmem:[%s222 + $0x170] sm:$0xff]
        %v338 = vld [vmem:[%s222 + $0x178] sm:$0xff]
        %v339 = vld [vmem:[%s222 + $0x180] sm:$0xff]
        %v340 = vld [vmem:[%s222 + $0x188] sm:$0xff]
        %v341 = vld [vmem:[%s222 + $0x190] sm:$0xff]
        %v342 = vld [vmem:[%s222 + $0x198] sm:$0xff]
        %v343 = vld [vmem:[%s222 + $0x1a0] sm:$0xff]
        %v344 = vld [vmem:[%s222 + $0x1a8] sm:$0xff]
        %v345 = vld [vmem:[%s222 + $0x1b0] sm:$0xff]
        %v346 = vld [vmem:[%s222 + $0x1b8] sm:$0xff]
        %v347 = vld [vmem:[%s222 + $0x1c0] sm:$0xff]
        %v348 = vld [vmem:[%s222 + $0x1c8] sm:$0xff]
        %v349 = vld [vmem:[%s222 + $0x1d0] sm:$0xff]
        %v350 = vld [vmem:[%s222 + $0x1d8] sm:$0xff]
        %v351 = vld [vmem:[%s222 + $0x1e0] sm:$0xff]
        %v352 = vld [vmem:[%s222 + $0x1e8] sm:$0xff]
        %v353 = vld [vmem:[%s222 + $0x1f0] sm:$0xff]
        %v354 = vld [vmem:[%s222 + $0x1f8] sm:$0xff]
        %v355 = vld [vmem:[%s222 + $0x200] sm:$0xff]
        %v356 = vld [vmem:[%s222 + $0x208] sm:$0xff]
        %v357 = vld [vmem:[%s222 + $0x210] sm:$0xff]
        %v358 = vld [vmem:[%s222 + $0x218] sm:$0xff]
        %v359 = vld [vmem:[%s222 + $0x220] sm:$0xff]
        %v360 = vld [vmem:[%s222 + $0x228] sm:$0xff]
        %v361 = vld [vmem:[%s222 + $0x230] sm:$0xff]
        %v362 = vld [vmem:[%s222 + $0x238] sm:$0xff]
        %v363 = vld [vmem:[%s222 + $0x240] sm:$0xff]
        %v364 = vld [vmem:[%s222 + $0x248] sm:$0xff]
        %v365 = vld [vmem:[%s222 + $0x250] sm:$0xff]
        %v366 = vld [vmem:[%s222 + $0x258] sm:$0xff]
        %v367 = vld [vmem:[%s222 + $0x260] sm:$0xff]
        %v368 = vld [vmem:[%s222 + $0x268] sm:$0xff]
        %v369 = vld [vmem:[%s222 + $0x270] sm:$0xff]
        %v370 = vld [vmem:[%s222 + $0x278] sm:$0xff]
        %v371 = vld [vmem:[%s222 + $0x280] sm:$0xff]
        %v372 = vld [vmem:[%s222 + $0x288] sm:$0xff]
        %v373 = vld [vmem:[%s222 + $0x290] sm:$0xff]
        %v374 = vld [vmem:[%s222 + $0x298] sm:$0xff]
        %v375 = vld [vmem:[%s222 + $0x2a0] sm:$0xff]
        %v376 = vld [vmem:[%s222 + $0x2a8] sm:$0xff]
        %v377 = vld [vmem:[%s222 + $0x2b0] sm:$0xff]
        %v378 = vld [vmem:[%s222 + $0x2b8] sm:$0xff]
        %v379 = vld [vmem:[%s222 + $0x2c0] sm:$0xff]
        %v380 = vld [vmem:[%s222 + $0x2c8] sm:$0xff]
        %v381 = vld [vmem:[%s222 + $0x2d0] sm:$0xff]
        %v382 = vld [vmem:[%s222 + $0x2d8] sm:$0xff]
        %v383 = vld [vmem:[%s222 + $0x2e0] sm:$0xff]
        %v384 = vld [vmem:[%s222 + $0x2e8] sm:$0xff]
        %v385 = vld [vmem:[%s222 + $0x2f0] sm:$0xff]
        %v386 = vld [vmem:[%s222 + $0x2f8] sm:$0xff]
        %v387 = vld [vmem:[%s222 + $0x300] sm:$0xff]
        %v388 = vld [vmem:[%s222 + $0x308] sm:$0xff]
        %v389 = vld [vmem:[%s222 + $0x310] sm:$0xff]
        %v390 = vld [vmem:[%s222 + $0x318] sm:$0xff]
        %v391 = vld [vmem:[%s222 + $0x320] sm:$0xff]
        %v392 = vld [vmem:[%s222 + $0x328] sm:$0xff]
        %v393 = vld [vmem:[%s222 + $0x330] sm:$0xff]
        %v394 = vld [vmem:[%s222 + $0x338] sm:$0xff]
        %v395 = vld [vmem:[%s222 + $0x340] sm:$0xff]
        %v396 = vld [vmem:[%s222 + $0x348] sm:$0xff]
        %v397 = vld [vmem:[%s222 + $0x350] sm:$0xff]
        %v398 = vld [vmem:[%s222 + $0x358] sm:$0xff]
        %v399 = vld [vmem:[%s222 + $0x360] sm:$0xff]
        %v400 = vld [vmem:[%s222 + $0x368] sm:$0xff]
        %v401 = vld [vmem:[%s222 + $0x370] sm:$0xff]
        %v402 = vld [vmem:[%s222 + $0x378] sm:$0xff]
        %v403 = vld [vmem:[%s222 + $0x380] sm:$0xff]
        %v404 = vld [vmem:[%s222 + $0x388] sm:$0xff]
        %v405 = vld [vmem:[%s222 + $0x390] sm:$0xff]
        %v406 = vld [vmem:[%s222 + $0x398] sm:$0xff]
        %v407 = vld [vmem:[%s222 + $0x3a0] sm:$0xff]
        %v408 = vld [vmem:[%s222 + $0x3a8] sm:$0xff]
        %v409 = vld [vmem:[%s222 + $0x3b0] sm:$0xff]
        %v410 = vld [vmem:[%s222 + $0x3b8] sm:$0xff]
        %v411 = vld [vmem:[%s222 + $0x3c0] sm:$0xff]
        %v412 = vld [vmem:[%s222 + $0x3c8] sm:$0xff]
        %v413 = vld [vmem:[%s222 + $0x3d0] sm:$0xff]
        %v414 = vld [vmem:[%s222 + $0x3d8] sm:$0xff]
        %v415 = vld [vmem:[%s222 + $0x3e0] sm:$0xff]
        %v416 = vld [vmem:[%s222 + $0x3e8] sm:$0xff]
        %v417 = vld [vmem:[%s222 + $0x3f0] sm:$0xff]
        %v418 = vld [vmem:[%s222 + $0x3f8] sm:$0xff]
        %v419 = vld [vmem:[%s222 + $0x400] sm:$0xff]
        %v420 = vld [vmem:[%s222 + $0x408] sm:$0xff]
        %v421 = vld [vmem:[%s222 + $0x410] sm:$0xff]
        %v422 = vld [vmem:[%s222 + $0x418] sm:$0xff]
        %v423 = vld [vmem:[%s222 + $0x420] sm:$0xff]
        %v424 = vld [vmem:[%s222 + $0x428] sm:$0xff]
        %v425 = vld [vmem:[%s222 + $0x430] sm:$0xff]
        %v426 = vld [vmem:[%s222 + $0x438] sm:$0xff]
        %v427 = vld [vmem:[%s222 + $0x440] sm:$0xff]
        %v428 = vld [vmem:[%s222 + $0x448] sm:$0xff]
        %v429 = vld [vmem:[%s222 + $0x450] sm:$0xff]
        %v430 = vld [vmem:[%s222 + $0x458] sm:$0xff]
        %v431 = vld [vmem:[%s222 + $0x460] sm:$0xff]
        %v432 = vld [vmem:[%s222 + $0x468] sm:$0xff]
        %v433 = vld [vmem:[%s222 + $0x470] sm:$0xff]
        %v434 = vld [vmem:[%s222 + $0x478] sm:$0xff]
        %v435 = vld [vmem:[%s222 + $0x480] sm:$0xff]
        %v436 = vld [vmem:[%s222 + $0x488] sm:$0xff]
        %v437 = vld [vmem:[%s222 + $0x490] sm:$0xff]
        %v438 = vld [vmem:[%s222 + $0x498] sm:$0xff]
        %v439 = vld [vmem:[%s222 + $0x4a0] sm:$0xff]
        %v440 = vld [vmem:[%s222 + $0x4a8] sm:$0xff]
        %v441 = vld [vmem:[%s222 + $0x4b0] sm:$0xff]
        %v442 = vld [vmem:[%s222 + $0x4b8] sm:$0xff]
        %v443 = vld [vmem:[%s222 + $0x4c0] sm:$0xff]
        %v444 = vld [vmem:[%s222 + $0x4c8] sm:$0xff]
        %v445 = vld [vmem:[%s222 + $0x4d0] sm:$0xff]
        %v446 = vld [vmem:[%s222 + $0x4d8] sm:$0xff]
        %v447 = vld [vmem:[%s222 + $0x4e0] sm:$0xff]
        %v448 = vld [vmem:[%s222 + $0x4e8] sm:$0xff]
        %v449 = vld [vmem:[%s222 + $0x4f0] sm:$0xff]
        %v450 = vld [vmem:[%s222 + $0x4f8] sm:$0xff]
        %v451 = vld [vmem:[%s222 + $0x500] sm:$0xff]
        %v452 = vld [vmem:[%s222 + $0x508] sm:$0xff]
        %v453 = vld [vmem:[%s222 + $0x510] sm:$0xff]
        %v454 = vld [vmem:[%s222 + $0x518] sm:$0xff]
        %v455 = vld [vmem:[%s222 + $0x520] sm:$0xff]
        %v456 = vld [vmem:[%s222 + $0x528] sm:$0xff]
        %v457 = vld [vmem:[%s222 + $0x530] sm:$0xff]
        %v458 = vld [vmem:[%s222 + $0x538] sm:$0xff]
        %v459 = vld [vmem:[%s222 + $0x540] sm:$0xff]
        %v460 = vld [vmem:[%s222 + $0x548] sm:$0xff]
        %v461 = vld [vmem:[%s222 + $0x550] sm:$0xff]
        %v462 = vld [vmem:[%s222 + $0x558] sm:$0xff]
        %v463 = vld [vmem:[%s222 + $0x560] sm:$0xff]
        %v464 = vld [vmem:[%s222 + $0x568] sm:$0xff]
        %v465 = vld [vmem:[%s222 + $0x570] sm:$0xff]
        %v466 = vld [vmem:[%s222 + $0x578] sm:$0xff]
        %v467 = vld [vmem:[%s222 + $0x580] sm:$0xff]
        %v468 = vld [vmem:[%s222 + $0x588] sm:$0xff]
        %v469 = vld [vmem:[%s222 + $0x590] sm:$0xff]
        %v470 = vld [vmem:[%s222 + $0x598] sm:$0xff]
        %v471 = vld [vmem:[%s222 + $0x5a0] sm:$0xff]
        %v472 = vld [vmem:[%s222 + $0x5a8] sm:$0xff]
        %v473 = vld [vmem:[%s222 + $0x5b0] sm:$0xff]
        %v474 = vld [vmem:[%s222 + $0x5b8] sm:$0xff]
        %v475 = vld [vmem:[%s222 + $0x5c0] sm:$0xff]
        %v476 = vld [vmem:[%s222 + $0x5c8] sm:$0xff]
        %v477 = vld [vmem:[%s222 + $0x5d0] sm:$0xff]
        %v478 = vld [vmem:[%s222 + $0x5d8] sm:$0xff]
        %v479 = vld [vmem:[%s222 + $0x5e0] sm:$0xff]
        %v480 = vld [vmem:[%s222 + $0x5e8] sm:$0xff]
        %v481 = vld [vmem:[%s222 + $0x5f0] sm:$0xff]
        %v482 = vld [vmem:[%s222 + $0x5f8] sm:$0xff]
        %v483 = vld [vmem:[%s222 + $0x600] sm:$0xff]
        %v484 = vld [vmem:[%s222 + $0x608] sm:$0xff]
        %v485 = vld [vmem:[%s222 + $0x610] sm:$0xff]
        %v486 = vld [vmem:[%s222 + $0x618] sm:$0xff]
        %v487 = vld [vmem:[%s222 + $0x620] sm:$0xff]
        %v488 = vld [vmem:[%s222 + $0x628] sm:$0xff]
        %v489 = vld [vmem:[%s222 + $0x630] sm:$0xff]
        %v490 = vld [vmem:[%s222 + $0x638] sm:$0xff]
        %v491 = vld [vmem:[%s222 + $0x640] sm:$0xff]
        %v492 = vld [vmem:[%s222 + $0x648] sm:$0xff]
        %v493 = vld [vmem:[%s222 + $0x650] sm:$0xff]
        %v494 = vld [vmem:[%s222 + $0x658] sm:$0xff]
        %v495 = vld [vmem:[%s222 + $0x660] sm:$0xff]
        %v496 = vld [vmem:[%s222 + $0x668] sm:$0xff]
        %v497 = vld [vmem:[%s222 + $0x670] sm:$0xff]
        %v498 = vld [vmem:[%s222 + $0x678] sm:$0xff]
        %v499 = vld [vmem:[%s222 + $0x680] sm:$0xff]
        %v500 = vld [vmem:[%s222 + $0x688] sm:$0xff]
        %v501 = vld [vmem:[%s222 + $0x690] sm:$0xff]
        %v502 = vld [vmem:[%s222 + $0x698] sm:$0xff]
        %v503 = vld [vmem:[%s222 + $0x6a0] sm:$0xff]
        %v504 = vld [vmem:[%s222 + $0x6a8] sm:$0xff]
        %v505 = vld [vmem:[%s222 + $0x6b0] sm:$0xff]
        %v506 = vld [vmem:[%s222 + $0x6b8] sm:$0xff]
        %v507 = vld [vmem:[%s222 + $0x6c0] sm:$0xff]
        %v508 = vld [vmem:[%s222 + $0x6c8] sm:$0xff]
        %v509 = vld [vmem:[%s222 + $0x6d0] sm:$0xff]
        %v510 = vld [vmem:[%s222 + $0x6d8] sm:$0xff]
        %v511 = vld [vmem:[%s222 + $0x6e0] sm:$0xff]
        %v512 = vld [vmem:[%s222 + $0x6e8] sm:$0xff]
        %v513 = vld [vmem:[%s222 + $0x6f0] sm:$0xff]
        %v514 = vld [vmem:[%s222 + $0x6f8] sm:$0xff]
        %v516 = vcombine.high %v290, %v290
        %v518 = vunpack.c.l.s4 1966171168
        %v519 = vunpack.c.0.s8 %v518
        %v520 = vlaneseq
        %v521 = vshrl.u32 %v520, 7
        %v522 = vsub.s32 %v519, %v521
        %v523 = vrot.slane %v290, %v522
        %v525 = vunpack.c.l.s4 1966171168
        %v526 = vunpack.c.0.s8 %v525
        %v527 = vlaneseq
        %v528 = vshrl.u32 %v527, 7
        %v529 = vsub.s32 %v526, %v528
        %v530 = vrot.slane %v516, %v529
        %v531 = vcombine.high %v523, %v523
        %v532 = vcombine.high %v530, %v530
        %v534 = vunpack.c.l.s4 1966171168
        %v535 = vunpack.c.0.s8 %v534
        %v536 = vlaneseq
        %v537 = vshrl.u32 %v536, 7
        %v538 = vsub.s32 %v535, %v537
        %v539 = vrot.slane %v523, %v538
        %v541 = vunpack.c.l.s4 1966171168
        %v542 = vunpack.c.0.s8 %v541
        %v543 = vlaneseq
        %v544 = vshrl.u32 %v543, 7
        %v545 = vsub.s32 %v542, %v544
        %v546 = vrot.slane %v530, %v545
        %v548 = vunpack.c.l.s4 1966171168
        %v549 = vunpack.c.0.s8 %v548
        %v550 = vlaneseq
        %v551 = vshrl.u32 %v550, 7
        %v552 = vsub.s32 %v549, %v551
        %v553 = vrot.slane %v531, %v552
        %v555 = vunpack.c.l.s4 1966171168
        %v556 = vunpack.c.0.s8 %v555
        %v557 = vlaneseq
        %v558 = vshrl.u32 %v557, 7
        %v559 = vsub.s32 %v556, %v558
        %v560 = vrot.slane %v532, %v559
        %v561 = vcombine.high %v539, %v539
        %v562 = vcombine.high %v546, %v546
        %v563 = vcombine.high %v553, %v553
        %v795 = vunpack.c.l.b16 %v291
        %v796 = vunpack.c.h.b16 %v291
        %v797 = vunpack.c.l.b16 %v292
        %v798 = vunpack.c.h.b16 %v292
        %v799 = vunpack.c.l.b16 %v293
        %v800 = vunpack.c.h.b16 %v293
        %v801 = vunpack.c.l.b16 %v294
        %v802 = vunpack.c.h.b16 %v294
        %v803 = vunpack.c.l.b16 %v295
        %v804 = vunpack.c.h.b16 %v295
        %v805 = vunpack.c.l.b16 %v296
        %v806 = vunpack.c.h.b16 %v296
        %v807 = vunpack.c.l.b16 %v297
        %v808 = vunpack.c.h.b16 %v297
        %v809 = vunpack.c.l.b16 %v298
        %v810 = vunpack.c.h.b16 %v298
        %v811 = vunpack.c.l.b16 %v299
        %v812 = vunpack.c.h.b16 %v299
        %v813 = vunpack.c.l.b16 %v300
        %v814 = vunpack.c.h.b16 %v300
        %v815 = vunpack.c.l.b16 %v301
        %v816 = vunpack.c.h.b16 %v301
        %v817 = vunpack.c.l.b16 %v302
        %v818 = vunpack.c.h.b16 %v302
        %v819 = vunpack.c.l.b16 %v303
        %v820 = vunpack.c.h.b16 %v303
        %v821 = vunpack.c.l.b16 %v304
        %v822 = vunpack.c.h.b16 %v304
        %v823 = vunpack.c.l.b16 %v305
        %v824 = vunpack.c.h.b16 %v305
        %v825 = vunpack.c.l.b16 %v306
        %v826 = vunpack.c.h.b16 %v306
        %v827 = vunpack.c.l.b16 %v307
        %v828 = vunpack.c.h.b16 %v307
        %v829 = vunpack.c.l.b16 %v308
        %v830 = vunpack.c.h.b16 %v308
        %v831 = vunpack.c.l.b16 %v309
        %v832 = vunpack.c.h.b16 %v309
        %v833 = vunpack.c.l.b16 %v310
        %v834 = vunpack.c.h.b16 %v310
        %v835 = vunpack.c.l.b16 %v311
        %v836 = vunpack.c.h.b16 %v311
        %v837 = vunpack.c.l.b16 %v312
        %v838 = vunpack.c.h.b16 %v312
        %v839 = vunpack.c.l.b16 %v313
        %v840 = vunpack.c.h.b16 %v313
        %v841 = vunpack.c.l.b16 %v314
        %v842 = vunpack.c.h.b16 %v314
        %v843 = vunpack.c.l.b16 %v315
        %v844 = vunpack.c.h.b16 %v315
        %v845 = vunpack.c.l.b16 %v316
        %v846 = vunpack.c.h.b16 %v316
        %v847 = vunpack.c.l.b16 %v317
        %v848 = vunpack.c.h.b16 %v317
        %v849 = vunpack.c.l.b16 %v318
        %v850 = vunpack.c.h.b16 %v318
        %v851 = vunpack.c.l.b16 %v319
        %v852 = vunpack.c.h.b16 %v319
        %v853 = vunpack.c.l.b16 %v320
        %v854 = vunpack.c.h.b16 %v320
        %v855 = vunpack.c.l.b16 %v321
        %v856 = vunpack.c.h.b16 %v321
        %v857 = vunpack.c.l.b16 %v322
        %v858 = vunpack.c.h.b16 %v322
        %v859 = vunpack.c.l.b16 %v323
        %v860 = vunpack.c.h.b16 %v323
        %v861 = vunpack.c.l.b16 %v324
        %v862 = vunpack.c.h.b16 %v324
        %v863 = vunpack.c.l.b16 %v325
        %v864 = vunpack.c.h.b16 %v325
        %v865 = vunpack.c.l.b16 %v326
        %v866 = vunpack.c.h.b16 %v326
        %v867 = vunpack.c.l.b16 %v327
        %v868 = vunpack.c.h.b16 %v327
        %v869 = vunpack.c.l.b16 %v328
        %v870 = vunpack.c.h.b16 %v328
        %v871 = vunpack.c.l.b16 %v329
        %v872 = vunpack.c.h.b16 %v329
        %v873 = vunpack.c.l.b16 %v330
        %v874 = vunpack.c.h.b16 %v330
        %v875 = vunpack.c.l.b16 %v331
        %v876 = vunpack.c.h.b16 %v331
        %v877 = vunpack.c.l.b16 %v332
        %v878 = vunpack.c.h.b16 %v332
        %v879 = vunpack.c.l.b16 %v333
        %v880 = vunpack.c.h.b16 %v333
        %v881 = vunpack.c.l.b16 %v334
        %v882 = vunpack.c.h.b16 %v334
        %v883 = vunpack.c.l.b16 %v335
        %v884 = vunpack.c.h.b16 %v335
        %v885 = vunpack.c.l.b16 %v336
        %v886 = vunpack.c.h.b16 %v336
        %v887 = vunpack.c.l.b16 %v337
        %v888 = vunpack.c.h.b16 %v337
        %v889 = vunpack.c.l.b16 %v338
        %v890 = vunpack.c.h.b16 %v338
        %v891 = vunpack.c.l.b16 %v339
        %v892 = vunpack.c.h.b16 %v339
        %v893 = vunpack.c.l.b16 %v340
        %v894 = vunpack.c.h.b16 %v340
        %v895 = vunpack.c.l.b16 %v341
        %v896 = vunpack.c.h.b16 %v341
        %v897 = vunpack.c.l.b16 %v342
        %v898 = vunpack.c.h.b16 %v342
        %v899 = vunpack.c.l.b16 %v343
        %v900 = vunpack.c.h.b16 %v343
        %v901 = vunpack.c.l.b16 %v344
        %v902 = vunpack.c.h.b16 %v344
        %v903 = vunpack.c.l.b16 %v345
        %v904 = vunpack.c.h.b16 %v345
        %v905 = vunpack.c.l.b16 %v346
        %v906 = vunpack.c.h.b16 %v346
        %v907 = vunpack.c.l.b16 %v347
        %v908 = vunpack.c.h.b16 %v347
        %v909 = vunpack.c.l.b16 %v348
        %v910 = vunpack.c.h.b16 %v348
        %v911 = vunpack.c.l.b16 %v349
        %v912 = vunpack.c.h.b16 %v349
        %v913 = vunpack.c.l.b16 %v350
        %v914 = vunpack.c.h.b16 %v350
        %v915 = vunpack.c.l.b16 %v351
        %v916 = vunpack.c.h.b16 %v351
        %v917 = vunpack.c.l.b16 %v352
        %v918 = vunpack.c.h.b16 %v352
        %v919 = vunpack.c.l.b16 %v353
        %v920 = vunpack.c.h.b16 %v353
        %v921 = vunpack.c.l.b16 %v354
        %v922 = vunpack.c.h.b16 %v354
        %v923 = vunpack.c.l.b16 %v355
        %v924 = vunpack.c.h.b16 %v355
        %v925 = vunpack.c.l.b16 %v356
        %v926 = vunpack.c.h.b16 %v356
        %v927 = vunpack.c.l.b16 %v357
        %v928 = vunpack.c.h.b16 %v357
        %v929 = vunpack.c.l.b16 %v358
        %v930 = vunpack.c.h.b16 %v358
        %v931 = vunpack.c.l.b16 %v359
        %v932 = vunpack.c.h.b16 %v359
        %v933 = vunpack.c.l.b16 %v360
        %v934 = vunpack.c.h.b16 %v360
        %v935 = vunpack.c.l.b16 %v361
        %v936 = vunpack.c.h.b16 %v361
        %v937 = vunpack.c.l.b16 %v362
        %v938 = vunpack.c.h.b16 %v362
        %v939 = vunpack.c.l.b16 %v363
        %v940 = vunpack.c.h.b16 %v363
        %v941 = vunpack.c.l.b16 %v364
        %v942 = vunpack.c.h.b16 %v364
        %v943 = vunpack.c.l.b16 %v365
        %v944 = vunpack.c.h.b16 %v365
        %v945 = vunpack.c.l.b16 %v366
        %v946 = vunpack.c.h.b16 %v366
        %v947 = vunpack.c.l.b16 %v367
        %v948 = vunpack.c.h.b16 %v367
        %v949 = vunpack.c.l.b16 %v368
        %v950 = vunpack.c.h.b16 %v368
        %v951 = vunpack.c.l.b16 %v369
        %v952 = vunpack.c.h.b16 %v369
        %v953 = vunpack.c.l.b16 %v370
        %v954 = vunpack.c.h.b16 %v370
        %v955 = vunpack.c.l.b16 %v371
        %v956 = vunpack.c.h.b16 %v371
        %v957 = vunpack.c.l.b16 %v372
        %v958 = vunpack.c.h.b16 %v372
        %v959 = vunpack.c.l.b16 %v373
        %v960 = vunpack.c.h.b16 %v373
        %v961 = vunpack.c.l.b16 %v374
        %v962 = vunpack.c.h.b16 %v374
        %v963 = vunpack.c.l.b16 %v375
        %v964 = vunpack.c.h.b16 %v375
        %v965 = vunpack.c.l.b16 %v376
        %v966 = vunpack.c.h.b16 %v376
        %v967 = vunpack.c.l.b16 %v377
        %v968 = vunpack.c.h.b16 %v377
        %v969 = vunpack.c.l.b16 %v378
        %v970 = vunpack.c.h.b16 %v378
        %v971 = vunpack.c.l.b16 %v379
        %v972 = vunpack.c.h.b16 %v379
        %v973 = vunpack.c.l.b16 %v380
        %v974 = vunpack.c.h.b16 %v380
        %v975 = vunpack.c.l.b16 %v381
        %v976 = vunpack.c.h.b16 %v381
        %v977 = vunpack.c.l.b16 %v382
        %v978 = vunpack.c.h.b16 %v382
        %v979 = vunpack.c.l.b16 %v383
        %v980 = vunpack.c.h.b16 %v383
        %v981 = vunpack.c.l.b16 %v384
        %v982 = vunpack.c.h.b16 %v384
        %v983 = vunpack.c.l.b16 %v385
        %v984 = vunpack.c.h.b16 %v385
        %v985 = vunpack.c.l.b16 %v386
        %v986 = vunpack.c.h.b16 %v386
        %v987 = vunpack.c.l.b16 %v387
        %v988 = vunpack.c.h.b16 %v387
        %v989 = vunpack.c.l.b16 %v388
        %v990 = vunpack.c.h.b16 %v388
        %v991 = vunpack.c.l.b16 %v389
        %v992 = vunpack.c.h.b16 %v389
        %v993 = vunpack.c.l.b16 %v390
        %v994 = vunpack.c.h.b16 %v390
        %v995 = vunpack.c.l.b16 %v391
        %v996 = vunpack.c.h.b16 %v391
        %v997 = vunpack.c.l.b16 %v392
        %v998 = vunpack.c.h.b16 %v392
        %v999 = vunpack.c.l.b16 %v393
        %v1000 = vunpack.c.h.b16 %v393
        %v1001 = vunpack.c.l.b16 %v394
        %v1002 = vunpack.c.h.b16 %v394
        %v1003 = vunpack.c.l.b16 %v395
        %v1004 = vunpack.c.h.b16 %v395
        %v1005 = vunpack.c.l.b16 %v396
        %v1006 = vunpack.c.h.b16 %v396
        %v1007 = vunpack.c.l.b16 %v397
        %v1008 = vunpack.c.h.b16 %v397
        %v1009 = vunpack.c.l.b16 %v398
        %v1010 = vunpack.c.h.b16 %v398
        %v1011 = vunpack.c.l.b16 %v399
        %v1012 = vunpack.c.h.b16 %v399
        %v1013 = vunpack.c.l.b16 %v400
        %v1014 = vunpack.c.h.b16 %v400
        %v1015 = vunpack.c.l.b16 %v401
        %v1016 = vunpack.c.h.b16 %v401
        %v1017 = vunpack.c.l.b16 %v402
        %v1018 = vunpack.c.h.b16 %v402
        %v1019 = vunpack.c.l.b16 %v403
        %v1020 = vunpack.c.h.b16 %v403
        %v1021 = vunpack.c.l.b16 %v404
        %v1022 = vunpack.c.h.b16 %v404
        %v1023 = vunpack.c.l.b16 %v405
        %v1024 = vunpack.c.h.b16 %v405
        %v1025 = vunpack.c.l.b16 %v406
        %v1026 = vunpack.c.h.b16 %v406
        %v1027 = vunpack.c.l.b16 %v407
        %v1028 = vunpack.c.h.b16 %v407
        %v1029 = vunpack.c.l.b16 %v408
        %v1030 = vunpack.c.h.b16 %v408
        %v1031 = vunpack.c.l.b16 %v409
        %v1032 = vunpack.c.h.b16 %v409
        %v1033 = vunpack.c.l.b16 %v410
        %v1034 = vunpack.c.h.b16 %v410
        %v1035 = vunpack.c.l.b16 %v411
        %v1036 = vunpack.c.h.b16 %v411
        %v1037 = vunpack.c.l.b16 %v412
        %v1038 = vunpack.c.h.b16 %v412
        %v1039 = vunpack.c.l.b16 %v413
        %v1040 = vunpack.c.h.b16 %v413
        %v1041 = vunpack.c.l.b16 %v414
        %v1042 = vunpack.c.h.b16 %v414
        %v1043 = vunpack.c.l.b16 %v415
        %v1044 = vunpack.c.h.b16 %v415
        %v1045 = vunpack.c.l.b16 %v416
        %v1046 = vunpack.c.h.b16 %v416
        %v1047 = vunpack.c.l.b16 %v417
        %v1048 = vunpack.c.h.b16 %v417
        %v1049 = vunpack.c.l.b16 %v418
        %v1050 = vunpack.c.h.b16 %v418
        %v1051 = vunpack.c.l.b16 %v419
        %v1052 = vunpack.c.h.b16 %v419
        %v1053 = vunpack.c.l.b16 %v420
        %v1054 = vunpack.c.h.b16 %v420
        %v1055 = vunpack.c.l.b16 %v421
        %v1056 = vunpack.c.h.b16 %v421
        %v1057 = vunpack.c.l.b16 %v422
        %v1058 = vunpack.c.h.b16 %v422
        %v1059 = vunpack.c.l.b16 %v423
        %v1060 = vunpack.c.h.b16 %v423
        %v1061 = vunpack.c.l.b16 %v424
        %v1062 = vunpack.c.h.b16 %v424
        %v1063 = vunpack.c.l.b16 %v425
        %v1064 = vunpack.c.h.b16 %v425
        %v1065 = vunpack.c.l.b16 %v426
        %v1066 = vunpack.c.h.b16 %v426
        %v1067 = vunpack.c.l.b16 %v427
        %v1068 = vunpack.c.h.b16 %v427
        %v1069 = vunpack.c.l.b16 %v428
        %v1070 = vunpack.c.h.b16 %v428
        %v1071 = vunpack.c.l.b16 %v429
        %v1072 = vunpack.c.h.b16 %v429
        %v1073 = vunpack.c.l.b16 %v430
        %v1074 = vunpack.c.h.b16 %v430
        %v1075 = vunpack.c.l.b16 %v431
        %v1076 = vunpack.c.h.b16 %v431
        %v1077 = vunpack.c.l.b16 %v432
        %v1078 = vunpack.c.h.b16 %v432
        %v1079 = vunpack.c.l.b16 %v433
        %v1080 = vunpack.c.h.b16 %v433
        %v1081 = vunpack.c.l.b16 %v434
        %v1082 = vunpack.c.h.b16 %v434
        %v1083 = vunpack.c.l.b16 %v435
        %v1084 = vunpack.c.h.b16 %v435
        %v1085 = vunpack.c.l.b16 %v436
        %v1086 = vunpack.c.h.b16 %v436
        %v1087 = vunpack.c.l.b16 %v437
        %v1088 = vunpack.c.h.b16 %v437
        %v1089 = vunpack.c.l.b16 %v438
        %v1090 = vunpack.c.h.b16 %v438
        %v1091 = vunpack.c.l.b16 %v439
        %v1092 = vunpack.c.h.b16 %v439
        %v1093 = vunpack.c.l.b16 %v440
        %v1094 = vunpack.c.h.b16 %v440
        %v1095 = vunpack.c.l.b16 %v441
        %v1096 = vunpack.c.h.b16 %v441
        %v1097 = vunpack.c.l.b16 %v442
        %v1098 = vunpack.c.h.b16 %v442
        %v1099 = vunpack.c.l.b16 %v443
        %v1100 = vunpack.c.h.b16 %v443
        %v1101 = vunpack.c.l.b16 %v444
        %v1102 = vunpack.c.h.b16 %v444
        %v1103 = vunpack.c.l.b16 %v445
        %v1104 = vunpack.c.h.b16 %v445
        %v1105 = vunpack.c.l.b16 %v446
        %v1106 = vunpack.c.h.b16 %v446
        %v1107 = vunpack.c.l.b16 %v447
        %v1108 = vunpack.c.h.b16 %v447
        %v1109 = vunpack.c.l.b16 %v448
        %v1110 = vunpack.c.h.b16 %v448
        %v1111 = vunpack.c.l.b16 %v449
        %v1112 = vunpack.c.h.b16 %v449
        %v1113 = vunpack.c.l.b16 %v450
        %v1114 = vunpack.c.h.b16 %v450
        %v1115 = vunpack.c.l.b16 %v451
        %v1116 = vunpack.c.h.b16 %v451
        %v1117 = vunpack.c.l.b16 %v452
        %v1118 = vunpack.c.h.b16 %v452
        %v1119 = vunpack.c.l.b16 %v453
        %v1120 = vunpack.c.h.b16 %v453
        %v1121 = vunpack.c.l.b16 %v454
        %v1122 = vunpack.c.h.b16 %v454
        %v1123 = vunpack.c.l.b16 %v455
        %v1124 = vunpack.c.h.b16 %v455
        %v1125 = vunpack.c.l.b16 %v456
        %v1126 = vunpack.c.h.b16 %v456
        %v1127 = vunpack.c.l.b16 %v457
        %v1128 = vunpack.c.h.b16 %v457
        %v1129 = vunpack.c.l.b16 %v458
        %v1130 = vunpack.c.h.b16 %v458
        %v1131 = vunpack.c.l.b16 %v459
        %v1132 = vunpack.c.h.b16 %v459
        %v1133 = vunpack.c.l.b16 %v460
        %v1134 = vunpack.c.h.b16 %v460
        %v1135 = vunpack.c.l.b16 %v461
        %v1136 = vunpack.c.h.b16 %v461
        %v1137 = vunpack.c.l.b16 %v462
        %v1138 = vunpack.c.h.b16 %v462
        %v1139 = vunpack.c.l.b16 %v463
        %v1140 = vunpack.c.h.b16 %v463
        %v1141 = vunpack.c.l.b16 %v464
        %v1142 = vunpack.c.h.b16 %v464
        %v1143 = vunpack.c.l.b16 %v465
        %v1144 = vunpack.c.h.b16 %v465
        %v1145 = vunpack.c.l.b16 %v466
        %v1146 = vunpack.c.h.b16 %v466
        %v1147 = vunpack.c.l.b16 %v467
        %v1148 = vunpack.c.h.b16 %v467
        %v1149 = vunpack.c.l.b16 %v468
        %v1150 = vunpack.c.h.b16 %v468
        %v1151 = vunpack.c.l.b16 %v469
        %v1152 = vunpack.c.h.b16 %v469
        %v1153 = vunpack.c.l.b16 %v470
        %v1154 = vunpack.c.h.b16 %v470
        %v1155 = vunpack.c.l.b16 %v471
        %v1156 = vunpack.c.h.b16 %v471
        %v1157 = vunpack.c.l.b16 %v472
        %v1158 = vunpack.c.h.b16 %v472
        %v1159 = vunpack.c.l.b16 %v473
        %v1160 = vunpack.c.h.b16 %v473
        %v1161 = vunpack.c.l.b16 %v474
        %v1162 = vunpack.c.h.b16 %v474
        %v1163 = vunpack.c.l.b16 %v475
        %v1164 = vunpack.c.h.b16 %v475
        %v1165 = vunpack.c.l.b16 %v476
        %v1166 = vunpack.c.h.b16 %v476
        %v1167 = vunpack.c.l.b16 %v477
        %v1168 = vunpack.c.h.b16 %v477
        %v1169 = vunpack.c.l.b16 %v478
        %v1170 = vunpack.c.h.b16 %v478
        %v1171 = vunpack.c.l.b16 %v479
        %v1172 = vunpack.c.h.b16 %v479
        %v1173 = vunpack.c.l.b16 %v480
        %v1174 = vunpack.c.h.b16 %v480
        %v1175 = vunpack.c.l.b16 %v481
        %v1176 = vunpack.c.h.b16 %v481
        %v1177 = vunpack.c.l.b16 %v482
        %v1178 = vunpack.c.h.b16 %v482
        %v1179 = vunpack.c.l.b16 %v483
        %v1180 = vunpack.c.h.b16 %v483
        %v1181 = vunpack.c.l.b16 %v484
        %v1182 = vunpack.c.h.b16 %v484
        %v1183 = vunpack.c.l.b16 %v485
        %v1184 = vunpack.c.h.b16 %v485
        %v1185 = vunpack.c.l.b16 %v486
        %v1186 = vunpack.c.h.b16 %v486
        %v1187 = vunpack.c.l.b16 %v487
        %v1188 = vunpack.c.h.b16 %v487
        %v1189 = vunpack.c.l.b16 %v488
        %v1190 = vunpack.c.h.b16 %v488
        %v1191 = vunpack.c.l.b16 %v489
        %v1192 = vunpack.c.h.b16 %v489
        %v1193 = vunpack.c.l.b16 %v490
        %v1194 = vunpack.c.h.b16 %v490
        %v1195 = vunpack.c.l.b16 %v491
        %v1196 = vunpack.c.h.b16 %v491
        %v1197 = vunpack.c.l.b16 %v492
        %v1198 = vunpack.c.h.b16 %v492
        %v1199 = vunpack.c.l.b16 %v493
        %v1200 = vunpack.c.h.b16 %v493
        %v1201 = vunpack.c.l.b16 %v494
        %v1202 = vunpack.c.h.b16 %v494
        %v1203 = vunpack.c.l.b16 %v495
        %v1204 = vunpack.c.h.b16 %v495
        %v1205 = vunpack.c.l.b16 %v496
        %v1206 = vunpack.c.h.b16 %v496
        %v1207 = vunpack.c.l.b16 %v497
        %v1208 = vunpack.c.h.b16 %v497
        %v1209 = vunpack.c.l.b16 %v498
        %v1210 = vunpack.c.h.b16 %v498
        %v1211 = vunpack.c.l.b16 %v499
        %v1212 = vunpack.c.h.b16 %v499
        %v1213 = vunpack.c.l.b16 %v500
        %v1214 = vunpack.c.h.b16 %v500
        %v1215 = vunpack.c.l.b16 %v501
        %v1216 = vunpack.c.h.b16 %v501
        %v1217 = vunpack.c.l.b16 %v502
        %v1218 = vunpack.c.h.b16 %v502
        %v1219 = vunpack.c.l.b16 %v503
        %v1220 = vunpack.c.h.b16 %v503
        %v1221 = vunpack.c.l.b16 %v504
        %v1222 = vunpack.c.h.b16 %v504
        %v1223 = vunpack.c.l.b16 %v505
        %v1224 = vunpack.c.h.b16 %v505
        %v1225 = vunpack.c.l.b16 %v506
        %v1226 = vunpack.c.h.b16 %v506
        %v1227 = vunpack.c.l.b16 %v507
        %v1228 = vunpack.c.h.b16 %v507
        %v1229 = vunpack.c.l.b16 %v508
        %v1230 = vunpack.c.h.b16 %v508
        %v1231 = vunpack.c.l.b16 %v509
        %v1232 = vunpack.c.h.b16 %v509
        %v1233 = vunpack.c.l.b16 %v510
        %v1234 = vunpack.c.h.b16 %v510
        %v1235 = vunpack.c.l.b16 %v511
        %v1236 = vunpack.c.h.b16 %v511
        %v1237 = vunpack.c.l.b16 %v512
        %v1238 = vunpack.c.h.b16 %v512
        %v1239 = vunpack.c.l.b16 %v513
        %v1240 = vunpack.c.h.b16 %v513
        %v1241 = vunpack.c.l.b16 %v514
        %v1242 = vunpack.c.h.b16 %v514
        %v1243 = vpack.c.b16 %v799, %v795
        %v1244 = vpack.c.b16 %v800, %v796
        %v1245 = vpack.c.b16 %v801, %v797
        %v1246 = vpack.c.b16 %v802, %v798
        %v1247 = vpack.c.b16 %v807, %v803
        %v1248 = vpack.c.b16 %v808, %v804
        %v1249 = vpack.c.b16 %v809, %v805
        %v1250 = vpack.c.b16 %v810, %v806
        %v1251 = vpack.c.b16 %v815, %v811
        %v1252 = vpack.c.b16 %v816, %v812
        %v1253 = vpack.c.b16 %v817, %v813
        %v1254 = vpack.c.b16 %v818, %v814
        %v1255 = vpack.c.b16 %v823, %v819
        %v1256 = vpack.c.b16 %v824, %v820
        %v1257 = vpack.c.b16 %v825, %v821
        %v1258 = vpack.c.b16 %v826, %v822
        %v1259 = vpack.c.b16 %v831, %v827
        %v1260 = vpack.c.b16 %v832, %v828
        %v1261 = vpack.c.b16 %v833, %v829
        %v1262 = vpack.c.b16 %v834, %v830
        %v1263 = vpack.c.b16 %v839, %v835
        %v1264 = vpack.c.b16 %v840, %v836
        %v1265 = vpack.c.b16 %v841, %v837
        %v1266 = vpack.c.b16 %v842, %v838
        %v1267 = vpack.c.b16 %v847, %v843
        %v1268 = vpack.c.b16 %v848, %v844
        %v1269 = vpack.c.b16 %v849, %v845
        %v1270 = vpack.c.b16 %v850, %v846
        %v1271 = vpack.c.b16 %v855, %v851
        %v1272 = vpack.c.b16 %v856, %v852
        %v1273 = vpack.c.b16 %v857, %v853
        %v1274 = vpack.c.b16 %v858, %v854
        %v1275 = vpack.c.b16 %v863, %v859
        %v1276 = vpack.c.b16 %v864, %v860
        %v1277 = vpack.c.b16 %v865, %v861
        %v1278 = vpack.c.b16 %v866, %v862
        %v1279 = vpack.c.b16 %v871, %v867
        %v1280 = vpack.c.b16 %v872, %v868
        %v1281 = vpack.c.b16 %v873, %v869
        %v1282 = vpack.c.b16 %v874, %v870
        %v1283 = vpack.c.b16 %v879, %v875
        %v1284 = vpack.c.b16 %v880, %v876
        %v1285 = vpack.c.b16 %v881, %v877
        %v1286 = vpack.c.b16 %v882, %v878
        %v1287 = vpack.c.b16 %v887, %v883
        %v1288 = vpack.c.b16 %v888, %v884
        %v1289 = vpack.c.b16 %v889, %v885
        %v1290 = vpack.c.b16 %v890, %v886
        %v1291 = vpack.c.b16 %v895, %v891
        %v1292 = vpack.c.b16 %v896, %v892
        %v1293 = vpack.c.b16 %v897, %v893
        %v1294 = vpack.c.b16 %v898, %v894
        %v1295 = vpack.c.b16 %v903, %v899
        %v1296 = vpack.c.b16 %v904, %v900
        %v1297 = vpack.c.b16 %v905, %v901
        %v1298 = vpack.c.b16 %v906, %v902
        %v1299 = vpack.c.b16 %v911, %v907
        %v1300 = vpack.c.b16 %v912, %v908
        %v1301 = vpack.c.b16 %v913, %v909
        %v1302 = vpack.c.b16 %v914, %v910
        %v1303 = vpack.c.b16 %v919, %v915
        %v1304 = vpack.c.b16 %v920, %v916
        %v1305 = vpack.c.b16 %v921, %v917
        %v1306 = vpack.c.b16 %v922, %v918
        %v1307 = vpack.c.b16 %v927, %v923
        %v1308 = vpack.c.b16 %v928, %v924
        %v1309 = vpack.c.b16 %v929, %v925
        %v1310 = vpack.c.b16 %v930, %v926
        %v1311 = vpack.c.b16 %v935, %v931
        %v1312 = vpack.c.b16 %v936, %v932
        %v1313 = vpack.c.b16 %v937, %v933
        %v1314 = vpack.c.b16 %v938, %v934
        %v1315 = vpack.c.b16 %v943, %v939
        %v1316 = vpack.c.b16 %v944, %v940
        %v1317 = vpack.c.b16 %v945, %v941
        %v1318 = vpack.c.b16 %v946, %v942
        %v1319 = vpack.c.b16 %v951, %v947
        %v1320 = vpack.c.b16 %v952, %v948
        %v1321 = vpack.c.b16 %v953, %v949
        %v1322 = vpack.c.b16 %v954, %v950
        %v1323 = vpack.c.b16 %v959, %v955
        %v1324 = vpack.c.b16 %v960, %v956
        %v1325 = vpack.c.b16 %v961, %v957
        %v1326 = vpack.c.b16 %v962, %v958
        %v1327 = vpack.c.b16 %v967, %v963
        %v1328 = vpack.c.b16 %v968, %v964
        %v1329 = vpack.c.b16 %v969, %v965
        %v1330 = vpack.c.b16 %v970, %v966
        %v1331 = vpack.c.b16 %v975, %v971
        %v1332 = vpack.c.b16 %v976, %v972
        %v1333 = vpack.c.b16 %v977, %v973
        %v1334 = vpack.c.b16 %v978, %v974
        %v1335 = vpack.c.b16 %v983, %v979
        %v1336 = vpack.c.b16 %v984, %v980
        %v1337 = vpack.c.b16 %v985, %v981
        %v1338 = vpack.c.b16 %v986, %v982
        %v1339 = vpack.c.b16 %v991, %v987
        %v1340 = vpack.c.b16 %v992, %v988
        %v1341 = vpack.c.b16 %v993, %v989
        %v1342 = vpack.c.b16 %v994, %v990
        %v1343 = vpack.c.b16 %v999, %v995
        %v1344 = vpack.c.b16 %v1000, %v996
        %v1345 = vpack.c.b16 %v1001, %v997
        %v1346 = vpack.c.b16 %v1002, %v998
        %v1347 = vpack.c.b16 %v1007, %v1003
        %v1348 = vpack.c.b16 %v1008, %v1004
        %v1349 = vpack.c.b16 %v1009, %v1005
        %v1350 = vpack.c.b16 %v1010, %v1006
        %v1351 = vpack.c.b16 %v1015, %v1011
        %v1352 = vpack.c.b16 %v1016, %v1012
        %v1353 = vpack.c.b16 %v1017, %v1013
        %v1354 = vpack.c.b16 %v1018, %v1014
        %v1355 = vpack.c.b16 %v1023, %v1019
        %v1356 = vpack.c.b16 %v1024, %v1020
        %v1357 = vpack.c.b16 %v1025, %v1021
        %v1358 = vpack.c.b16 %v1026, %v1022
        %v1359 = vpack.c.b16 %v1031, %v1027
        %v1360 = vpack.c.b16 %v1032, %v1028
        %v1361 = vpack.c.b16 %v1033, %v1029
        %v1362 = vpack.c.b16 %v1034, %v1030
        %v1363 = vpack.c.b16 %v1039, %v1035
        %v1364 = vpack.c.b16 %v1040, %v1036
        %v1365 = vpack.c.b16 %v1041, %v1037
        %v1366 = vpack.c.b16 %v1042, %v1038
        %v1367 = vpack.c.b16 %v1047, %v1043
        %v1368 = vpack.c.b16 %v1048, %v1044
        %v1369 = vpack.c.b16 %v1049, %v1045
        %v1370 = vpack.c.b16 %v1050, %v1046
        %v1371 = vpack.c.b16 %v1055, %v1051
        %v1372 = vpack.c.b16 %v1056, %v1052
        %v1373 = vpack.c.b16 %v1057, %v1053
        %v1374 = vpack.c.b16 %v1058, %v1054
        %v1375 = vpack.c.b16 %v1063, %v1059
        %v1376 = vpack.c.b16 %v1064, %v1060
        %v1377 = vpack.c.b16 %v1065, %v1061
        %v1378 = vpack.c.b16 %v1066, %v1062
        %v1379 = vpack.c.b16 %v1071, %v1067
        %v1380 = vpack.c.b16 %v1072, %v1068
        %v1381 = vpack.c.b16 %v1073, %v1069
        %v1382 = vpack.c.b16 %v1074, %v1070
        %v1383 = vpack.c.b16 %v1079, %v1075
        %v1384 = vpack.c.b16 %v1080, %v1076
        %v1385 = vpack.c.b16 %v1081, %v1077
        %v1386 = vpack.c.b16 %v1082, %v1078
        %v1387 = vpack.c.b16 %v1087, %v1083
        %v1388 = vpack.c.b16 %v1088, %v1084
        %v1389 = vpack.c.b16 %v1089, %v1085
        %v1390 = vpack.c.b16 %v1090, %v1086
        %v1391 = vpack.c.b16 %v1095, %v1091
        %v1392 = vpack.c.b16 %v1096, %v1092
        %v1393 = vpack.c.b16 %v1097, %v1093
        %v1394 = vpack.c.b16 %v1098, %v1094
        %v1395 = vpack.c.b16 %v1103, %v1099
        %v1396 = vpack.c.b16 %v1104, %v1100
        %v1397 = vpack.c.b16 %v1105, %v1101
        %v1398 = vpack.c.b16 %v1106, %v1102
        %v1399 = vpack.c.b16 %v1111, %v1107
        %v1400 = vpack.c.b16 %v1112, %v1108
        %v1401 = vpack.c.b16 %v1113, %v1109
        %v1402 = vpack.c.b16 %v1114, %v1110
        %v1403 = vpack.c.b16 %v1119, %v1115
        %v1404 = vpack.c.b16 %v1120, %v1116
        %v1405 = vpack.c.b16 %v1121, %v1117
        %v1406 = vpack.c.b16 %v1122, %v1118
        %v1407 = vpack.c.b16 %v1127, %v1123
        %v1408 = vpack.c.b16 %v1128, %v1124
        %v1409 = vpack.c.b16 %v1129, %v1125
        %v1410 = vpack.c.b16 %v1130, %v1126
        %v1411 = vpack.c.b16 %v1135, %v1131
        %v1412 = vpack.c.b16 %v1136, %v1132
        %v1413 = vpack.c.b16 %v1137, %v1133
        %v1414 = vpack.c.b16 %v1138, %v1134
        %v1415 = vpack.c.b16 %v1143, %v1139
        %v1416 = vpack.c.b16 %v1144, %v1140
        %v1417 = vpack.c.b16 %v1145, %v1141
        %v1418 = vpack.c.b16 %v1146, %v1142
        %v1419 = vpack.c.b16 %v1151, %v1147
        %v1420 = vpack.c.b16 %v1152, %v1148
        %v1421 = vpack.c.b16 %v1153, %v1149
        %v1422 = vpack.c.b16 %v1154, %v1150
        %v1423 = vpack.c.b16 %v1159, %v1155
        %v1424 = vpack.c.b16 %v1160, %v1156
        %v1425 = vpack.c.b16 %v1161, %v1157
        %v1426 = vpack.c.b16 %v1162, %v1158
        %v1427 = vpack.c.b16 %v1167, %v1163
        %v1428 = vpack.c.b16 %v1168, %v1164
        %v1429 = vpack.c.b16 %v1169, %v1165
        %v1430 = vpack.c.b16 %v1170, %v1166
        %v1431 = vpack.c.b16 %v1175, %v1171
        %v1432 = vpack.c.b16 %v1176, %v1172
        %v1433 = vpack.c.b16 %v1177, %v1173
        %v1434 = vpack.c.b16 %v1178, %v1174
        %v1435 = vpack.c.b16 %v1183, %v1179
        %v1436 = vpack.c.b16 %v1184, %v1180
        %v1437 = vpack.c.b16 %v1185, %v1181
        %v1438 = vpack.c.b16 %v1186, %v1182
        %v1439 = vpack.c.b16 %v1191, %v1187
        %v1440 = vpack.c.b16 %v1192, %v1188
        %v1441 = vpack.c.b16 %v1193, %v1189
        %v1442 = vpack.c.b16 %v1194, %v1190
        %v1443 = vpack.c.b16 %v1199, %v1195
        %v1444 = vpack.c.b16 %v1200, %v1196
        %v1445 = vpack.c.b16 %v1201, %v1197
        %v1446 = vpack.c.b16 %v1202, %v1198
        %v1447 = vpack.c.b16 %v1207, %v1203
        %v1448 = vpack.c.b16 %v1208, %v1204
        %v1449 = vpack.c.b16 %v1209, %v1205
        %v1450 = vpack.c.b16 %v1210, %v1206
        %v1451 = vpack.c.b16 %v1215, %v1211
        %v1452 = vpack.c.b16 %v1216, %v1212
        %v1453 = vpack.c.b16 %v1217, %v1213
        %v1454 = vpack.c.b16 %v1218, %v1214
        %v1455 = vpack.c.b16 %v1223, %v1219
        %v1456 = vpack.c.b16 %v1224, %v1220
        %v1457 = vpack.c.b16 %v1225, %v1221
        %v1458 = vpack.c.b16 %v1226, %v1222
        %v1459 = vpack.c.b16 %v1231, %v1227
        %v1460 = vpack.c.b16 %v1232, %v1228
        %v1461 = vpack.c.b16 %v1233, %v1229
        %v1462 = vpack.c.b16 %v1234, %v1230
        %v1463 = vpack.c.b16 %v1239, %v1235
        %v1464 = vpack.c.b16 %v1240, %v1236
        %v1465 = vpack.c.b16 %v1241, %v1237
        %v1466 = vpack.c.b16 %v1242, %v1238
        %1691 = vmatprep.subr.bf16.mxu0 %v1244
        %1692 = vmatpush1.bf16.msra.mxu0 %v1243
        %1693 = vmatprep.subr.bf16.mxu0 %v1248
        %1694 = vmatpush1.bf16.msra.mxu0 %v1247
        %1695 = vmatprep.subr.bf16.mxu0 %v1252
        %1696 = vmatpush1.bf16.msra.mxu0 %v1251
        %1697 = vmatprep.subr.bf16.mxu0 %v1256
        %1698 = vmatpush1.bf16.msra.mxu0 %v1255
        %1699 = vmatprep.subr.bf16.mxu0 %v1260
        %1700 = vmatpush1.bf16.msra.mxu0 %v1259
        %1701 = vmatprep.subr.bf16.mxu0 %v1264
        %1702 = vmatpush1.bf16.msra.mxu0 %v1263
        %1703 = vmatprep.subr.bf16.mxu0 %v1268
        %1704 = vmatpush1.bf16.msra.mxu0 %v1267
        %1705 = vmatprep.subr.bf16.mxu0 %v1272
        %1706 = vmatpush1.bf16.msra.mxu0 %v1271
        %1707 = vmatprep.subr.bf16.mxu0 %v1276
        %1708 = vmatpush1.bf16.msra.mxu0 %v1275
        %1709 = vmatprep.subr.bf16.mxu0 %v1280
        %1710 = vmatpush1.bf16.msra.mxu0 %v1279
        %1711 = vmatprep.subr.bf16.mxu0 %v1284
        %1712 = vmatpush1.bf16.msra.mxu0 %v1283
        %1713 = vmatprep.subr.bf16.mxu0 %v1288
        %1714 = vmatpush1.bf16.msra.mxu0 %v1287
        %1715 = vmatprep.subr.bf16.mxu0 %v1292
        %1716 = vmatpush1.bf16.msra.mxu0 %v1291
        %1717 = vmatprep.subr.bf16.mxu0 %v1296
        %1718 = vmatpush1.bf16.msra.mxu0 %v1295
        %1719 = vmatprep.subr.bf16.mxu0 %v1300
        %1720 = vmatpush1.bf16.msra.mxu0 %v1299
        %1721 = vmatprep.subr.bf16.mxu0 %v1304
        %1722 = vmatpush1.bf16.msra.mxu0 %v1303
        %1723 = vmatprep.mubr.bf16.mxu0 %v553
        %1724 = vmatmul.mubr.bf16.gmra.mrb[0].mxu0 %v539
        %v1725 = vpop.f32.mrb[0].mxu0
        %v1726 = vadd.f32 0.0, %v1725
        %v1727 = vpop.f32.mrb[0].mxu0
        %v1728 = vadd.f32 0.0, %v1727
        %v1729 = vpop.f32.mrb[0].mxu0
        %v1730 = vpop.f32.mrb[0].mxu0
        %1731 = vdwg.mxu0
        %1732 = vmatprep.subr.bf16.mxu0 %v1308
        %1733 = vmatpush1.bf16.msra.mxu0 %v1307
        %1734 = vmatprep.subr.bf16.mxu0 %v1312
        %1735 = vmatpush1.bf16.msra.mxu0 %v1311
        %1736 = vmatprep.subr.bf16.mxu0 %v1316
        %1737 = vmatpush1.bf16.msra.mxu0 %v1315
        %1738 = vmatprep.subr.bf16.mxu0 %v1320
        %1739 = vmatpush1.bf16.msra.mxu0 %v1319
        %1740 = vmatprep.subr.bf16.mxu0 %v1324
        %1741 = vmatpush1.bf16.msra.mxu0 %v1323
        %1742 = vmatprep.subr.bf16.mxu0 %v1328
        %1743 = vmatpush1.bf16.msra.mxu0 %v1327
        %1744 = vmatprep.subr.bf16.mxu0 %v1332
        %1745 = vmatpush1.bf16.msra.mxu0 %v1331
        %1746 = vmatprep.subr.bf16.mxu0 %v1336
        %1747 = vmatpush1.bf16.msra.mxu0 %v1335
        %1748 = vmatprep.subr.bf16.mxu0 %v1340
        %1749 = vmatpush1.bf16.msra.mxu0 %v1339
        %1750 = vmatprep.subr.bf16.mxu0 %v1344
        %1751 = vmatpush1.bf16.msra.mxu0 %v1343
        %1752 = vmatprep.subr.bf16.mxu0 %v1348
        %1753 = vmatpush1.bf16.msra.mxu0 %v1347
        %1754 = vmatprep.subr.bf16.mxu0 %v1352
        %1755 = vmatpush1.bf16.msra.mxu0 %v1351
        %1756 = vmatprep.subr.bf16.mxu0 %v1356
        %1757 = vmatpush1.bf16.msra.mxu0 %v1355
        %1758 = vmatprep.subr.bf16.mxu0 %v1360
        %1759 = vmatpush1.bf16.msra.mxu0 %v1359
        %1760 = vmatprep.subr.bf16.mxu0 %v1364
        %1761 = vmatpush1.bf16.msra.mxu0 %v1363
        %1762 = vmatprep.subr.bf16.mxu0 %v1368
        %1763 = vmatpush1.bf16.msra.mxu0 %v1367
        %1764 = vmatprep.mubr.bf16.mxu0 %v563
        %1765 = vmatmul.mubr.bf16.gmra.mrb[0].mxu0 %v561
        %v1766 = vpop.f32.mrb[0].mxu0
        %v1767 = vadd.f32 %v1726, %v1766
        %v1768 = vpop.f32.mrb[0].mxu0
        %v1769 = vadd.f32 %v1728, %v1768
        %v1770 = vpop.f32.mrb[0].mxu0
        %v1771 = vpop.f32.mrb[0].mxu0
        %1772 = vdwg.mxu0
        %1773 = vmatprep.subr.bf16.mxu0 %v1372
        %1774 = vmatpush1.bf16.msra.mxu0 %v1371
        %1775 = vmatprep.subr.bf16.mxu0 %v1376
        %1776 = vmatpush1.bf16.msra.mxu0 %v1375
        %1777 = vmatprep.subr.bf16.mxu0 %v1380
        %1778 = vmatpush1.bf16.msra.mxu0 %v1379
        %1779 = vmatprep.subr.bf16.mxu0 %v1384
        %1780 = vmatpush1.bf16.msra.mxu0 %v1383
        %1781 = vmatprep.subr.bf16.mxu0 %v1388
        %1782 = vmatpush1.bf16.msra.mxu0 %v1387
        %1783 = vmatprep.subr.bf16.mxu0 %v1392
        %1784 = vmatpush1.bf16.msra.mxu0 %v1391
        %1785 = vmatprep.subr.bf16.mxu0 %v1396
        %1786 = vmatpush1.bf16.msra.mxu0 %v1395
        %1787 = vmatprep.subr.bf16.mxu0 %v1400
        %1788 = vmatpush1.bf16.msra.mxu0 %v1399
        %1789 = vmatprep.subr.bf16.mxu0 %v1404
        %1790 = vmatpush1.bf16.msra.mxu0 %v1403
        %1791 = vmatprep.subr.bf16.mxu0 %v1408
        %1792 = vmatpush1.bf16.msra.mxu0 %v1407
        %1793 = vmatprep.subr.bf16.mxu0 %v1412
        %1794 = vmatpush1.bf16.msra.mxu0 %v1411
        %1795 = vmatprep.subr.bf16.mxu0 %v1416
        %1796 = vmatpush1.bf16.msra.mxu0 %v1415
        %1797 = vmatprep.subr.bf16.mxu0 %v1420
        %1798 = vmatpush1.bf16.msra.mxu0 %v1419
        %1799 = vmatprep.subr.bf16.mxu0 %v1424
        %1800 = vmatpush1.bf16.msra.mxu0 %v1423
        %1801 = vmatprep.subr.bf16.mxu0 %v1428
        %1802 = vmatpush1.bf16.msra.mxu0 %v1427
        %1803 = vmatprep.subr.bf16.mxu0 %v1432
        %1804 = vmatpush1.bf16.msra.mxu0 %v1431
        %1805 = vmatprep.mubr.bf16.mxu0 %v560
        %1806 = vmatmul.mubr.bf16.gmra.mrb[0].mxu0 %v546
        %v1807 = vpop.f32.mrb[0].mxu0
        %v1808 = vadd.f32 %v1767, %v1807
        %v1809 = vpop.f32.mrb[0].mxu0
        %v1810 = vadd.f32 %v1769, %v1809
        %v1811 = vpop.f32.mrb[0].mxu0
        %v1812 = vpop.f32.mrb[0].mxu0
        %1813 = vdwg.mxu0
        %1814 = vmatprep.subr.bf16.mxu0 %v1436
        %1815 = vmatpush1.bf16.msra.mxu0 %v1435
        %1816 = vmatprep.subr.bf16.mxu0 %v1440
        %1817 = vmatpush1.bf16.msra.mxu0 %v1439
        %1818 = vmatprep.subr.bf16.mxu0 %v1444
        %1819 = vmatpush1.bf16.msra.mxu0 %v1443
        %1820 = vmatprep.subr.bf16.mxu0 %v1448
        %1821 = vmatpush1.bf16.msra.mxu0 %v1447
        %1822 = vmatprep.subr.bf16.mxu0 %v1452
        %1823 = vmatpush1.bf16.msra.mxu0 %v1451
        %1824 = vmatprep.subr.bf16.mxu0 %v1456
        %1825 = vmatpush1.bf16.msra.mxu0 %v1455
        %1826 = vmatprep.subr.bf16.mxu0 %v1460
        %1827 = vmatpush1.bf16.msra.mxu0 %v1459
        %1828 = vmatprep.subr.bf16.mxu0 %v1464
        %1829 = vmatpush1.bf16.msra.mxu0 %v1463
        %1830 = vmatprep.subr.bf16.mxu0 0
        %1831 = vmatpush1.bf16.msra.mxu0 0
        %1832 = vmatprep.subr.bf16.mxu0 0
        %1833 = vmatpush1.bf16.msra.mxu0 0
        %1834 = vmatprep.subr.bf16.mxu0 0
        %1835 = vmatpush1.bf16.msra.mxu0 0
        %1836 = vmatprep.subr.bf16.mxu0 0
        %1837 = vmatpush1.bf16.msra.mxu0 0
        %1838 = vmatprep.subr.bf16.mxu0 0
        %1839 = vmatpush1.bf16.msra.mxu0 0
        %1840 = vmatprep.subr.bf16.mxu0 0
        %1841 = vmatpush1.bf16.msra.mxu0 0
        %1842 = vmatprep.subr.bf16.mxu0 0
        %1843 = vmatpush1.bf16.msra.mxu0 0
        %1844 = vmatprep.subr.bf16.mxu0 0
        %1845 = vmatpush1.bf16.msra.mxu0 0
        %1846 = vmatprep.mubr.bf16.mxu0 0
        %1847 = vmatmul.mubr.bf16.gmra.mrb[0].mxu0 %v562
        %v1848 = vpop.f32.mrb[0].mxu0
        %v1849 = vadd.f32 %v1808, %v1848
        %v1850 = vpop.f32.mrb[0].mxu0
        %v1851 = vadd.f32 %v1810, %v1850
        %v1852 = vpop.f32.mrb[0].mxu0
        %v1853 = vpop.f32.mrb[0].mxu0
        %1854 = vdwg.mxu0
        %1855 = vmatprep.subr.bf16.mxu0 %v1246
        %1856 = vmatpush1.bf16.msra.mxu0 %v1245
        %1857 = vmatprep.subr.bf16.mxu0 %v1250
        %1858 = vmatpush1.bf16.msra.mxu0 %v1249
        %1859 = vmatprep.subr.bf16.mxu0 %v1254
        %1860 = vmatpush1.bf16.msra.mxu0 %v1253
        %1861 = vmatprep.subr.bf16.mxu0 %v1258
        %1862 = vmatpush1.bf16.msra.mxu0 %v1257
        %1863 = vmatprep.subr.bf16.mxu0 %v1262
        %1864 = vmatpush1.bf16.msra.mxu0 %v1261
        %1865 = vmatprep.subr.bf16.mxu0 %v1266
        %1866 = vmatpush1.bf16.msra.mxu0 %v1265
        %1867 = vmatprep.subr.bf16.mxu0 %v1270
        %1868 = vmatpush1.bf16.msra.mxu0 %v1269
        %1869 = vmatprep.subr.bf16.mxu0 %v1274
        %1870 = vmatpush1.bf16.msra.mxu0 %v1273
        %1871 = vmatprep.subr.bf16.mxu0 %v1278
        %1872 = vmatpush1.bf16.msra.mxu0 %v1277
        %1873 = vmatprep.subr.bf16.mxu0 %v1282
        %1874 = vmatpush1.bf16.msra.mxu0 %v1281
        %1875 = vmatprep.subr.bf16.mxu0 %v1286
        %1876 = vmatpush1.bf16.msra.mxu0 %v1285
        %1877 = vmatprep.subr.bf16.mxu0 %v1290
        %1878 = vmatpush1.bf16.msra.mxu0 %v1289
        %1879 = vmatprep.subr.bf16.mxu0 %v1294
        %1880 = vmatpush1.bf16.msra.mxu0 %v1293
        %1881 = vmatprep.subr.bf16.mxu0 %v1298
        %1882 = vmatpush1.bf16.msra.mxu0 %v1297
        %1883 = vmatprep.subr.bf16.mxu0 %v1302
        %1884 = vmatpush1.bf16.msra.mxu0 %v1301
        %1885 = vmatprep.subr.bf16.mxu0 %v1306
        %1886 = vmatpush1.bf16.msra.mxu0 %v1305
        %1887 = vmatprep.mubr.bf16.mxu0 %v553
        %1888 = vmatmul.mubr.bf16.gmra.mrb[0].mxu0 %v539
        %v1889 = vpop.f32.mrb[0].mxu0
        %v1890 = vadd.f32 0.0, %v1889
        %v1891 = vpop.f32.mrb[0].mxu0
        %v1892 = vadd.f32 0.0, %v1891
        %v1893 = vpop.f32.mrb[0].mxu0
        %v1894 = vpop.f32.mrb[0].mxu0
        %1895 = vdwg.mxu0
        %1896 = vmatprep.subr.bf16.mxu0 %v1310
        %1897 = vmatpush1.bf16.msra.mxu0 %v1309
        %1898 = vmatprep.subr.bf16.mxu0 %v1314
        %1899 = vmatpush1.bf16.msra.mxu0 %v1313
        %1900 = vmatprep.subr.bf16.mxu0 %v1318
        %1901 = vmatpush1.bf16.msra.mxu0 %v1317
        %1902 = vmatprep.subr.bf16.mxu0 %v1322
        %1903 = vmatpush1.bf16.msra.mxu0 %v1321
        %1904 = vmatprep.subr.bf16.mxu0 %v1326
        %1905 = vmatpush1.bf16.msra.mxu0 %v1325
        %1906 = vmatprep.subr.bf16.mxu0 %v1330
        %1907 = vmatpush1.bf16.msra.mxu0 %v1329
        %1908 = vmatprep.subr.bf16.mxu0 %v1334
        %1909 = vmatpush1.bf16.msra.mxu0 %v1333
        %1910 = vmatprep.subr.bf16.mxu0 %v1338
        %1911 = vmatpush1.bf16.msra.mxu0 %v1337
        %1912 = vmatprep.subr.bf16.mxu0 %v1342
        %1913 = vmatpush1.bf16.msra.mxu0 %v1341
        %1914 = vmatprep.subr.bf16.mxu0 %v1346
        %1915 = vmatpush1.bf16.msra.mxu0 %v1345
        %1916 = vmatprep.subr.bf16.mxu0 %v1350
        %1917 = vmatpush1.bf16.msra.mxu0 %v1349
        %1918 = vmatprep.subr.bf16.mxu0 %v1354
        %1919 = vmatpush1.bf16.msra.mxu0 %v1353
        %1920 = vmatprep.subr.bf16.mxu0 %v1358
        %1921 = vmatpush1.bf16.msra.mxu0 %v1357
        %1922 = vmatprep.subr.bf16.mxu0 %v1362
        %1923 = vmatpush1.bf16.msra.mxu0 %v1361
        %1924 = vmatprep.subr.bf16.mxu0 %v1366
        %1925 = vmatpush1.bf16.msra.mxu0 %v1365
        %1926 = vmatprep.subr.bf16.mxu0 %v1370
        %1927 = vmatpush1.bf16.msra.mxu0 %v1369
        %1928 = vmatprep.mubr.bf16.mxu0 %v563
        %1929 = vmatmul.mubr.bf16.gmra.mrb[0].mxu0 %v561
        %v1930 = vpop.f32.mrb[0].mxu0
        %v1931 = vadd.f32 %v1890, %v1930
        %v1932 = vpop.f32.mrb[0].mxu0
        %v1933 = vadd.f32 %v1892, %v1932
        %v1934 = vpop.f32.mrb[0].mxu0
        %v1935 = vpop.f32.mrb[0].mxu0
        %1936 = vdwg.mxu0
        %1937 = vmatprep.subr.bf16.mxu0 %v1374
        %1938 = vmatpush1.bf16.msra.mxu0 %v1373
        %1939 = vmatprep.subr.bf16.mxu0 %v1378
        %1940 = vmatpush1.bf16.msra.mxu0 %v1377
        %1941 = vmatprep.subr.bf16.mxu0 %v1382
        %1942 = vmatpush1.bf16.msra.mxu0 %v1381
        %1943 = vmatprep.subr.bf16.mxu0 %v1386
        %1944 = vmatpush1.bf16.msra.mxu0 %v1385
        %1945 = vmatprep.subr.bf16.mxu0 %v1390
        %1946 = vmatpush1.bf16.msra.mxu0 %v1389
        %1947 = vmatprep.subr.bf16.mxu0 %v1394
        %1948 = vmatpush1.bf16.msra.mxu0 %v1393
        %1949 = vmatprep.subr.bf16.mxu0 %v1398
        %1950 = vmatpush1.bf16.msra.mxu0 %v1397
        %1951 = vmatprep.subr.bf16.mxu0 %v1402
        %1952 = vmatpush1.bf16.msra.mxu0 %v1401
        %1953 = vmatprep.subr.bf16.mxu0 %v1406
        %1954 = vmatpush1.bf16.msra.mxu0 %v1405
        %1955 = vmatprep.subr.bf16.mxu0 %v1410
        %1956 = vmatpush1.bf16.msra.mxu0 %v1409
        %1957 = vmatprep.subr.bf16.mxu0 %v1414
        %1958 = vmatpush1.bf16.msra.mxu0 %v1413
        %1959 = vmatprep.subr.bf16.mxu0 %v1418
        %1960 = vmatpush1.bf16.msra.mxu0 %v1417
        %1961 = vmatprep.subr.bf16.mxu0 %v1422
        %1962 = vmatpush1.bf16.msra.mxu0 %v1421
        %1963 = vmatprep.subr.bf16.mxu0 %v1426
        %1964 = vmatpush1.bf16.msra.mxu0 %v1425
        %1965 = vmatprep.subr.bf16.mxu0 %v1430
        %1966 = vmatpush1.bf16.msra.mxu0 %v1429
        %1967 = vmatprep.subr.bf16.mxu0 %v1434
        %1968 = vmatpush1.bf16.msra.mxu0 %v1433
        %1969 = vmatprep.mubr.bf16.mxu0 %v560
        %1970 = vmatmul.mubr.bf16.gmra.mrb[0].mxu0 %v546
        %v1971 = vpop.f32.mrb[0].mxu0
        %v1972 = vadd.f32 %v1931, %v1971
        %v1973 = vpop.f32.mrb[0].mxu0
        %v1974 = vadd.f32 %v1933, %v1973
        %v1975 = vpop.f32.mrb[0].mxu0
        %v1976 = vpop.f32.mrb[0].mxu0
        %1977 = vdwg.mxu0
        %1978 = vmatprep.subr.bf16.mxu0 %v1438
        %1979 = vmatpush1.bf16.msra.mxu0 %v1437
        %1980 = vmatprep.subr.bf16.mxu0 %v1442
        %1981 = vmatpush1.bf16.msra.mxu0 %v1441
        %1982 = vmatprep.subr.bf16.mxu0 %v1446
        %1983 = vmatpush1.bf16.msra.mxu0 %v1445
        %1984 = vmatprep.subr.bf16.mxu0 %v1450
        %1985 = vmatpush1.bf16.msra.mxu0 %v1449
        %1986 = vmatprep.subr.bf16.mxu0 %v1454
        %1987 = vmatpush1.bf16.msra.mxu0 %v1453
        %1988 = vmatprep.subr.bf16.mxu0 %v1458
        %1989 = vmatpush1.bf16.msra.mxu0 %v1457
        %1990 = vmatprep.subr.bf16.mxu0 %v1462
        %1991 = vmatpush1.bf16.msra.mxu0 %v1461
        %1992 = vmatprep.subr.bf16.mxu0 %v1466
        %1993 = vmatpush1.bf16.msra.mxu0 %v1465
        %1994 = vmatprep.subr.bf16.mxu0 0
        %1995 = vmatpush1.bf16.msra.mxu0 0
        %1996 = vmatprep.subr.bf16.mxu0 0
        %1997 = vmatpush1.bf16.msra.mxu0 0
        %1998 = vmatprep.subr.bf16.mxu0 0
        %1999 = vmatpush1.bf16.msra.mxu0 0
        %2000 = vmatprep.subr.bf16.mxu0 0
        %2001 = vmatpush1.bf16.msra.mxu0 0
        %2002 = vmatprep.subr.bf16.mxu0 0
        %2003 = vmatpush1.bf16.msra.mxu0 0
        %2004 = vmatprep.subr.bf16.mxu0 0
        %2005 = vmatpush1.bf16.msra.mxu0 0
        %2006 = vmatprep.subr.bf16.mxu0 0
        %2007 = vmatpush1.bf16.msra.mxu0 0
        %2008 = vmatprep.subr.bf16.mxu0 0
        %2009 = vmatpush1.bf16.msra.mxu0 0
        %2010 = vmatprep.mubr.bf16.mxu0 0
        %2011 = vmatmul.mubr.bf16.gmra.mrb[0].mxu0 %v562
        %v2012 = vpop.f32.mrb[0].mxu0
        %v2013 = vadd.f32 %v1972, %v2012
        %v2014 = vpop.f32.mrb[0].mxu0
        %v2015 = vadd.f32 %v1974, %v2014
        %v2016 = vpop.f32.mrb[0].mxu0
        %v2017 = vpop.f32.mrb[0].mxu0
        %2018 = vdwg.mxu0
        %v2023 = vcombine.low %v1849, %v1851
        %v2024 = vcombine.low %v2013, %v2015
        %v2026 = vunpack.c.l.s4 1983009808
        %v2027 = vunpack.c.0.s8 %v2026
        %v2028 = vlaneseq
        %v2029 = vshrl.u32 %v2028, 7
        %v2030 = vsub.s32 %v2027, %v2029
        %v2031 = vrot.slane %v2023, %v2030
        %v2033 = vunpack.c.l.s4 1983009808
        %v2034 = vunpack.c.0.s8 %v2033
        %v2035 = vlaneseq
        %v2036 = vshrl.u32 %v2035, 7
        %v2037 = vsub.s32 %v2034, %v2036
        %v2038 = vrot.slane %v2024, %v2037
        %v2039 = vcombine.low %v2031, %v2038
        %v2041 = vadd.f32 %v289, %v2039
        %2042 = vst [vmem:[#allocation2] sm:$0xff] %v2041
        %p2043 = scmp.eq.s32.totalorder %s25, 6
        // Predicated region
        $region45: #{vgg_classifier_forward.2} parent=31 // pred_check
          %p2044 = pneg %p2043
        $region46: #{vgg_classifier_forward.2} parent=31 // pred_check_branch
          %2046 = sbr.rel (%p2044) target = $region48
        $region47: #{vgg_classifier_forward.2} parent=31 // pred_region
          %v2047 = vld [vmem:[#allocation2] sm:$0xff]
          %v2048 = vld [vmem:[#allocation5] sm:$0xf]
          %v2050 = vlaneseq
          %v2051 = vshrl.u32 %v2050, 7
          %v2052 = vsub.s32 0, %v2051
          %v2053 = vrot.slane %v2048, %v2052
          %v2054 = vlaneseq
          %v2055 = vshrl.u32 %v2054, 7
          %v2056 = vsub.s32 1, %v2055
          %v2057 = vrot.slane %v2048, %v2056
          %v2058 = vlaneseq
          %v2059 = vshrl.u32 %v2058, 7
          %v2060 = vsub.s32 2, %v2059
          %v2061 = vrot.slane %v2048, %v2060
          %v2062 = vlaneseq
          %v2063 = vshrl.u32 %v2062, 7
          %v2064 = vsub.s32 3, %v2063
          %v2065 = vrot.slane %v2048, %v2064
          %v2066 = vcombine.low %v2053, %v2057
          %v2067 = vcombine.low %v2061, %v2065
          %v2069 = vunpack.c.l.s4 1983009808
          %v2070 = vunpack.c.0.s8 %v2069
          %v2071 = vlaneseq
          %v2072 = vshrl.u32 %v2071, 7
          %v2073 = vsub.s32 %v2070, %v2072
          %v2074 = vrot.slane %v2066, %v2073
          %v2076 = vunpack.c.l.s4 1983009808
          %v2077 = vunpack.c.0.s8 %v2076
          %v2078 = vlaneseq
          %v2079 = vshrl.u32 %v2078, 7
          %v2080 = vsub.s32 %v2077, %v2079
          %v2081 = vrot.slane %v2067, %v2080
          %v2082 = vcombine.low %v2074, %v2081
          %v2084 = vadd.f32 %v2047, %v2082
          %v2085 = vmax.f32 %v2084, 0.0
          %2086 = vst [vmem:[%s281] sm:$0xff] %v2085
        $region48: #{vgg_classifier_forward.2} parent=31 // pred_fallthru
          _
        %s2087 = smul.u32 4, %s24
        %p2088 = scmp.lt.s32.totalorder %s23, 0
        %s2089 = scalar_select %p2088, %s23, 0
        %p2090 = scmp.lt.s32.totalorder %s2087, 3
        %s2091 = scalar_select %p2090, %s2087, 3
        %s2092 = smul.addr %s2089, 4
        %s2093 = sadd.s32 %s2091, %s2092
        %s2094 = smul.addr %s2093, 2
        %s2095 = scalar_lea.vmem %s3, %s2094
        // Predicated region
        $region49: #{vgg_classifier_forward.2} parent=31 // pred_check
          %p2096 = pneg %p139
        $region50: #{vgg_classifier_forward.2} parent=31 // pred_check_branch
          %2098 = sbr.rel (%p2096) target = $region52
        $region51: #{vgg_classifier_forward.2} parent=31 // pred_region
          %s2099 = smul.u32 4, %s24
        $region52: #{vgg_classifier_forward.2} parent=31 // pred_fallthru
          _
        // Predicated region
        $region53: #{vgg_classifier_forward.2} parent=31 // pred_check
          %p2100 = pneg %p139
        $region54: #{vgg_classifier_forward.2} parent=31 // pred_check_branch
          %2102 = sbr.rel (%p2100) target = $region56
        $region55: #{vgg_classifier_forward.2} parent=31 // pred_region
          %s2103 = smul.u32 4, %s24
          %p2104 = scmp.lt.s32.totalorder %s23, 0
          %s2105 = scalar_select %p2104, %s23, 0
          %p2106 = scmp.lt.s32.totalorder %s2103, 3
          %s2107 = scalar_select %p2106, %s2103, 3
          %s2108 = smul.addr %s2105, 4
          %s2109 = sadd.s32 %s2107, %s2108
          %s2110 = smul.addr %s2109, 2
          %s2111 = scalar_lea.vmem %s3, %s2110
        $region56: #{vgg_classifier_forward.2} parent=31 // pred_fallthru
          _
      $region32: #{vgg_classifier_forward.2} parent=5 // pred_fallthru
        _
      %p2112 = scmp.le.s32.totalorder 2, %s13
      // Predicated region
      $region57: #{vgg_classifier_forward.2} parent=5 // pred_check
        %p2113 = pneg %p2112
      $region58: #{vgg_classifier_forward.2} parent=5 // pred_check_branch
        %2115 = sbr.rel (%p2113) target = $region60
      $region59: #{vgg_classifier_forward.2} parent=5 // pred_region
        %s2116 = ssub.s32 %s13, 2
      $region60: #{vgg_classifier_forward.2} parent=5 // pred_fallthru
        _
    $region6: #{vgg_classifier_forward.2} parent=1 // loop_footer
      %s17 = sadd.s32 1, %s13
    $region7: #{vgg_classifier_forward.2} parent=1 // loop_footer_branch
      %12 = sbr.rel target = $region3
    $region8: #{vgg_classifier_forward.2} parent=1 // loop_exit
      _
    %2117 = vsyncpa [#allocation4], 1
    %s2118 = scalar_lea.sflag [#allocation4], 1
    %2119 = vsyncpa %s2118, 1
    %2120 = vsyncpa [#allocation6], 1

</llo_original>
